<compile_context>
chip_gen: v5e
topology: v5e:2x2
jax: 0.10.0
libtpu: 0.0.40
codegen_flags: <defaults>
</compile_context>

<pallas_src>
import functools
import math

import jax
import jax.numpy as jnp
import numpy as np
from jax.experimental import pallas as pl
from jax.experimental.pallas import tpu as pltpu

# ----------------------------- problem sizes --------------------------------
BATCH = 2
INPLANES = 4
MID_PLANES = 8
PLANES = 8
IMG = 16
STRIDE = 1      # NOTE: the PyTorch module passes `stride` to BOTH 3x3 convs,
                # so stride>1 breaks its own residual shapes; stride=1 is the
                # only self-consistent setting (and the default).
BN_EPS = 1e-5
LANE = 128

assert MID_PLANES + PLANES <= LANE


def _round_up(x, m):
    return ((x + m - 1) // m) * m


@functools.lru_cache(maxsize=None)
def _num_tensorcores():
    """2 TensorCores per chip on v7x, 1 on v5e/v6e."""
    try:
        kind = jax.devices()[0].device_kind.lower()
        if "v7" in kind or "7x" in kind:
            return 2
    except Exception:
        pass
    return 1


def _block_rows(M):
    """Whole-M block on 1-TC chips; exactly 2 blocks on 2-TC chips."""
    m8 = _round_up(M, 8)
    if _num_tensorcores() >= 2 and m8 >= 512 and (m8 // 2) % 16 == 0:
        return min(m8 // 2, 1024)
    return min(m8, 1024)


# ------------------------------ Pallas kernels -------------------------------
def _stage1_kernel(p_ref, w_ref, s_ref, b_ref, o_ref):
    # (tm,K) bf16 @ (K,128) bf16 on the MXU, f32 accumulation.
    acc = jnp.dot(p_ref[...], w_ref[...], preferred_element_type=jnp.float32)
    y = acc * s_ref[...] + b_ref[...]                 # folded BN (conv1 + downsample)
    lane = jax.lax.broadcasted_iota(jnp.int32, y.shape, 1)
    # ReLU only on the conv1 lanes; the downsample/identity lanes stay linear.
    y = jnp.where(lane < MID_PLANES, jnp.maximum(y, 0.0), y)
    o_ref[...] = y.astype(o_ref.dtype)                # bf16 writeback


def _stage2_kernel(p_ref, w_ref, s_ref, b_ref, r_ref, o_ref):
    acc = jnp.dot(p_ref[...], w_ref[...], preferred_element_type=jnp.float32)
    # folded BN2 + residual add (identity sits at the same lanes as conv2's
    # output channels, so the raw stage-1 buffer is added directly) + ReLU.
    y = acc * s_ref[...] + b_ref[...] + r_ref[...].astype(jnp.float32)
    o_ref[...] = jnp.maximum(y, 0.0).astype(o_ref.dtype)


def _fused_matmul(kernel, patches, w_kn, scale, shift, *, residual=None,
                  out_dtype=jnp.float32):
    """maybe_relu( (patches @ w_kn) * scale + shift [+ residual] ).

    patches: (M,K); w_kn: (K,128) bf16 (packed at init); scale/shift: (1,128)
    f32; residual: (>=Mp,128) or None.  Returns (Mp,128); caller slices.
    """
    M, K = patches.shape
    Kw, N = w_kn.shape
    assert K == Kw and N % LANE == 0

    tm = _block_rows(M)
    Mp = _round_up(M, tm)

    x = patches if patches.dtype == jnp.bfloat16 else patches.astype(jnp.bfloat16)
    if Mp != M:
        x = jnp.zeros((Mp, K), jnp.bfloat16).at[:M].set(x)

    in_specs = [
        pl.BlockSpec((tm, K), lambda i: (i, 0)),   # patch tile (full K)
        pl.BlockSpec((K, N), lambda i: (0, 0)),    # full (small) packed weight
        pl.BlockSpec((1, N), lambda i: (0, 0)),    # BN scale
        pl.BlockSpec((1, N), lambda i: (0, 0)),    # BN shift
    ]
    args = [x, w_kn, scale, shift]
    if residual is not None:
        r = residual
        if r.shape[0] < Mp:
            r = jnp.zeros((Mp, N), r.dtype).at[:r.shape[0]].set(r)
        elif r.shape[0] > Mp:
            r = r[:Mp]
        in_specs.append(pl.BlockSpec((tm, N), lambda i: (i, 0)))
        args.append(r)

    return pl.pallas_call(
        kernel,
        out_shape=jax.ShapeDtypeStruct((Mp, N), out_dtype),
        grid=(Mp // tm,),
        in_specs=in_specs,
        out_specs=pl.BlockSpec((tm, N), lambda i: (i, 0)),
        compiler_params=pltpu.CompilerParams(
            dimension_semantics=("parallel",)),
    )(*args)


# ------------------------------ conv via im2col ------------------------------
def _im2col_nhwc(x, kh, kw, stride, pad):
    """(B,H,W,C) -> patches (B*OH*OW, kh*kw*C), columns in (kh,kw,C) order."""
    B, H, W, C = x.shape
    if pad:
        x = jnp.pad(x, ((0, 0), (pad, pad), (pad, pad), (0, 0)))
    Hp, Wp = H + 2 * pad, W + 2 * pad
    oh = (Hp - kh) // stride + 1
    ow = (Wp - kw) // stride + 1
    ii = (jnp.arange(oh) * stride)[:, None] + jnp.arange(kh)[None, :]   # (oh,kh)
    jj = (jnp.arange(ow) * stride)[:, None] + jnp.arange(kw)[None, :]   # (ow,kw)
    p = x[:, ii[:, :, None, None], jj[None, None, :, :], :]  # (B,oh,kh,ow,kw,C)
    p = p.transpose(0, 1, 3, 2, 4, 5)                         # (B,oh,ow,kh,kw,C)
    return p.reshape(B * oh * ow, kh * kw * C), oh, ow


# ------------------------------ parameter setup ------------------------------
def _conv_weight(key, oc, ic, k):
    bound = 1.0 / math.sqrt(ic * k * k)        # PyTorch kaiming_uniform_(a=sqrt(5))
    return jax.random.uniform(key, (oc, ic, k, k), jnp.float32, -bound, bound)


def _bn_stats(key, c):
    k1, k2, k3, k4 = jax.random.split(key, 4)
    gamma = jax.random.uniform(k1, (c,), jnp.float32, 0.5, 1.5)
    beta = 0.1 * jax.random.normal(k2, (c,), jnp.float32)
    mean = 0.1 * jax.random.normal(k3, (c,), jnp.float32)
    var = jax.random.uniform(k4, (c,), jnp.float32, 0.5, 1.5)
    return gamma, beta, mean, var


def _fold_bn(stats):
    gamma, beta, mean, var = stats
    scale = gamma / jnp.sqrt(var + BN_EPS)
    shift = beta - mean * scale
    return scale, shift


def init_params(key):
    ks = jax.random.split(key, 6)
    raw = {
        "w1": _conv_weight(ks[0], MID_PLANES, INPLANES, 3),
        "bn1": _bn_stats(ks[1], MID_PLANES),
        "w2": _conv_weight(ks[2], PLANES, MID_PLANES, 3),
        "bn2": _bn_stats(ks[3], PLANES),
        "wd": _conv_weight(ks[4], PLANES, INPLANES, 1),
        "bnd": _bn_stats(ks[5], PLANES),
    }

    # --- stage 1 packed weight: conv1 at lanes [0,MID), downsample 1x1 at
    #     lanes [MID, MID+PLANES) scattered into the center-tap rows.
    k1 = 3 * 3 * INPLANES
    w1p = jnp.zeros((k1, LANE), jnp.float32)
    w1p = w1p.at[:, :MID_PLANES].set(
        raw["w1"].transpose(2, 3, 1, 0).reshape(k1, MID_PLANES))
    ctr = (1 * 3 + 1) * INPLANES          # (kh=1,kw=1) tap in (kh,kw,c) order
    w1p = w1p.at[ctr:ctr + INPLANES, MID_PLANES:MID_PLANES + PLANES].set(
        raw["wd"].transpose(2, 3, 1, 0).reshape(INPLANES, PLANES))

    s1, b1 = _fold_bn(raw["bn1"])
    sd, bd = _fold_bn(raw["bnd"])
    s1d = (jnp.zeros((1, LANE), jnp.float32)
           .at[0, :MID_PLANES].set(s1)
           .at[0, MID_PLANES:MID_PLANES + PLANES].set(sd))
    b1d = (jnp.zeros((1, LANE), jnp.float32)
           .at[0, :MID_PLANES].set(b1)
           .at[0, MID_PLANES:MID_PLANES + PLANES].set(bd))

    # --- stage 2 packed weight: conv2 output channels at lanes [MID, MID+PLANES)
    #     so the raw stage-1 output (identity at those lanes) is a lane-aligned
    #     residual.
    k2 = 3 * 3 * MID_PLANES
    w2p = jnp.zeros((k2, LANE), jnp.float32)
    w2p = w2p.at[:, MID_PLANES:MID_PLANES + PLANES].set(
        raw["w2"].transpose(2, 3, 1, 0).reshape(k2, PLANES))
    s2, b2 = _fold_bn(raw["bn2"])
    s2d = jnp.zeros((1, LANE), jnp.float32).at[0, MID_PLANES:MID_PLANES + PLANES].set(s2)
    b2d = jnp.zeros((1, LANE), jnp.float32).at[0, MID_PLANES:MID_PLANES + PLANES].set(b2)

    proc = {
        "w1d": w1p.astype(jnp.bfloat16), "s1d": s1d, "b1d": b1d,
        "w2": w2p.astype(jnp.bfloat16), "s2": s2d, "b2": b2d,
    }
    return raw, proc


# --------------------------------- forward ----------------------------------
def forward(proc, x):
    B, C, H, W = x.shape
    x_nhwc = jnp.transpose(x, (0, 2, 3, 1))

    # Stage 1: conv1(3x3,pad=1)+BN1+ReLU fused with downsample conv1x1+BN.
    p1, oh, ow = _im2col_nhwc(x_nhwc, 3, 3, STRIDE, 1)
    m1 = B * oh * ow
    y1 = _fused_matmul(_stage1_kernel, p1, proc["w1d"], proc["s1d"], proc["b1d"],
                       out_dtype=jnp.bfloat16)                 # (Mp,128) bf16
    # lanes [0,MID): h1 = relu(bn1(conv1 x));  lanes [MID,MID+PLANES): identity
    h1 = y1[:m1, :MID_PLANES].reshape(B, oh, ow, MID_PLANES)   # NHWC, bf16

    # Stage 2: conv2(3x3,pad=1)+BN2 + residual add + final ReLU.
    p2, oh2, ow2 = _im2col_nhwc(h1, 3, 3, STRIDE, 1)
    m2 = B * oh2 * ow2
    y2 = _fused_matmul(_stage2_kernel, p2, proc["w2"], proc["s2"], proc["b2"],
                       residual=y1, out_dtype=jnp.float32)
    out = y2[:m2, MID_PLANES:MID_PLANES + PLANES]
    return out.reshape(B, oh2, ow2, PLANES).transpose(0, 3, 1, 2)


# ------------------------------ pure-JAX reference ---------------------------
def ref_forward(raw, x):
    def conv(z, w, stride, pad):
        return jax.lax.conv_general_dilated(
            z, w, (stride, stride), [(pad, pad), (pad, pad)],
            dimension_numbers=("NCHW", "OIHW", "NCHW"))

    def bn(z, stats):
        gamma, beta, mean, var = stats
        inv = gamma / jnp.sqrt(var + BN_EPS)
        return (z - mean[None, :, None, None]) * inv[None, :, None, None] \
            + beta[None, :, None, None]

    out = jax.nn.relu(bn(conv(x, raw["w1"], STRIDE, 1), raw["bn1"]))
    out = bn(conv(out, raw["w2"], STRIDE, 1), raw["bn2"])
    identity = bn(conv(x, raw["wd"], STRIDE, 0), raw["bnd"])
    return jax.nn.relu(out + identity)


# ----------------------------------- main ------------------------------------
if __name__ == "__main__":
    key = jax.random.PRNGKey(0)
    pkey, xkey = jax.random.split(key)
    raw, proc = init_params(pkey)
    x = jax.random.normal(xkey, (BATCH, INPLANES, IMG, IMG), jnp.float32)

    out = jax.block_until_ready(jax.jit(forward)(proc, x))
    ref = jax.block_until_ready(jax.jit(ref_forward)(raw, x))

    assert out.shape == (BATCH, PLANES, IMG, IMG)
    # bf16 matmul operands / bf16 inter-stage activations vs all-f32 reference.
    np.testing.assert_allclose(np.asarray(out), np.asarray(ref),
                               rtol=5e-2, atol=5e-2)

    print("KERNEL_OK")
</pallas_src>

<mosaic_0001>
module attributes {stable_mosaic.version = 11 : i64} {
  func.func @_stage1_kernel(%arg0: i32, %arg1: memref<512x36xbf16, #tpu.memory_space<vmem>>, %arg2: memref<36x128xbf16, #tpu.memory_space<vmem>>, %arg3: memref<1x128xf32, #tpu.memory_space<vmem>>, %arg4: memref<1x128xf32, #tpu.memory_space<vmem>>, %arg5: memref<512x128xbf16, #tpu.memory_space<vmem>>) attributes {dimension_semantics = [#tpu.dimension_semantics<parallel>], iteration_bounds = array<i64: 1>, scalar_prefetch = 0 : i64, scratch_operands = 0 : i64, tpu.core_type = #tpu.core_type<tc>, window_params = [{transform_indices = @transform_0, window_bounds = array<i64: 512, 36>}, {pipeline_mode = #tpu.pipeline_mode<synchronous>, transform_indices = @transform_1, window_bounds = array<i64: 36, 128>}, {pipeline_mode = #tpu.pipeline_mode<synchronous>, transform_indices = @transform_2, window_bounds = array<i64: 1, 128>}, {pipeline_mode = #tpu.pipeline_mode<synchronous>, transform_indices = @transform_3, window_bounds = array<i64: 1, 128>}, {transform_indices = @transform_4, window_bounds = array<i64: 512, 128>}]} {
    %c0 = arith.constant 0 : index
    %c0_0 = arith.constant 0 : index
    %0 = vector.load %arg1[%c0, %c0_0] : memref<512x36xbf16, #tpu.memory_space<vmem>>, vector<512x36xbf16>
    %c0_1 = arith.constant 0 : index
    %c0_2 = arith.constant 0 : index
    %1 = vector.load %arg2[%c0_1, %c0_2] : memref<36x128xbf16, #tpu.memory_space<vmem>>, vector<36x128xbf16>
    %cst = arith.constant dense<0.000000e+00> : vector<512x128xf32>
    %2 = tpu.matmul %0, %1, %cst {dimension_numbers = #tpu.dot_dimension_numbers<[1], [0], [0], [1], [0, 0, 1, 1], [], []>} : vector<512x36xbf16>, vector<36x128xbf16>, vector<512x128xf32> -> vector<512x128xf32>
    %c0_3 = arith.constant 0 : index
    %c0_4 = arith.constant 0 : index
    %3 = vector.load %arg3[%c0_3, %c0_4] : memref<1x128xf32, #tpu.memory_space<vmem>>, vector<1x128xf32>
    %4 = vector.broadcast %3 : vector<1x128xf32> to vector<512x128xf32>
    %5 = arith.mulf %2, %4 : vector<512x128xf32>
    %c0_5 = arith.constant 0 : index
    %c0_6 = arith.constant 0 : index
    %6 = vector.load %arg4[%c0_5, %c0_6] : memref<1x128xf32, #tpu.memory_space<vmem>>, vector<1x128xf32>
    %7 = vector.broadcast %6 : vector<1x128xf32> to vector<512x128xf32>
    %8 = arith.addf %5, %7 : vector<512x128xf32>
    %9 = tpu.iota {dimensions = array<i32: 1>} : vector<512x128xi32>
    %c8_i32 = arith.constant 8 : i32
    %10 = vector.broadcast %c8_i32 : i32 to vector<512x128xi32>
    %11 = arith.cmpi slt, %9, %10 : vector<512x128xi32>
    %cst_7 = arith.constant 0.000000e+00 : f32
    %12 = vector.broadcast %cst_7 : f32 to vector<512x128xf32>
    %13 = arith.maximumf %8, %12 : vector<512x128xf32>
    %14 = arith.select %11, %13, %8 : vector<512x128xi1>, vector<512x128xf32>
    %15 = arith.truncf %14 : vector<512x128xf32> to vector<512x128xbf16>
    %c0_8 = arith.constant 0 : index
    %c0_9 = arith.constant 0 : index
    %16 = vector.load %arg5[%c0_8, %c0_9] : memref<512x128xbf16, #tpu.memory_space<vmem>>, vector<512x128xbf16>
    tpu.vector_store %arg5[%c0_8, %c0_9], %15 {strides = array<i32>} : memref<512x128xbf16, #tpu.memory_space<vmem>>, vector<512x128xbf16>,
    return
  }
  func.func @transform_0(%arg0: i32) -> (i32, i32) {
    %c0_i32 = arith.constant 0 : i32
    %c0_i32_0 = arith.constant 0 : i32
    return %arg0, %c0_i32 : i32, i32
  }
  func.func @transform_1(%arg0: i32) -> (i32, i32) {
    %c0_i32 = arith.constant 0 : i32
    %c0_i32_0 = arith.constant 0 : i32
    %c0_i32_1 = arith.constant 0 : i32
    return %c0_i32, %c0_i32_0 : i32, i32
  }
  func.func @transform_2(%arg0: i32) -> (i32, i32) {
    %c0_i32 = arith.constant 0 : i32
    %c0_i32_0 = arith.constant 0 : i32
    %c0_i32_1 = arith.constant 0 : i32
    return %c0_i32, %c0_i32_0 : i32, i32
  }
  func.func @transform_3(%arg0: i32) -> (i32, i32) {
    %c0_i32 = arith.constant 0 : i32
    %c0_i32_0 = arith.constant 0 : i32
    %c0_i32_1 = arith.constant 0 : i32
    return %c0_i32, %c0_i32_0 : i32, i32
  }
  func.func @transform_4(%arg0: i32) -> (i32, i32) {
    %c0_i32 = arith.constant 0 : i32
    %c0_i32_0 = arith.constant 0 : i32
    return %arg0, %c0_i32 : i32, i32
  }
}

module attributes {stable_mosaic.version = 11 : i64} {
  func.func @_stage2_kernel(%arg0: i32, %arg1: memref<512x72xbf16, #tpu.memory_space<vmem>>, %arg2: memref<72x128xbf16, #tpu.memory_space<vmem>>, %arg3: memref<1x128xf32, #tpu.memory_space<vmem>>, %arg4: memref<1x128xf32, #tpu.memory_space<vmem>>, %arg5: memref<512x128xbf16, #tpu.memory_space<vmem>>, %arg6: memref<512x128xf32, #tpu.memory_space<vmem>>) attributes {dimension_semantics = [#tpu.dimension_semantics<parallel>], iteration_bounds = array<i64: 1>, scalar_prefetch = 0 : i64, scratch_operands = 0 : i64, tpu.core_type = #tpu.core_type<tc>, window_params = [{transform_indices = @transform_0, window_bounds = array<i64: 512, 72>}, {pipeline_mode = #tpu.pipeline_mode<synchronous>, transform_indices = @transform_1, window_bounds = array<i64: 72, 128>}, {pipeline_mode = #tpu.pipeline_mode<synchronous>, transform_indices = @transform_2, window_bounds = array<i64: 1, 128>}, {pipeline_mode = #tpu.pipeline_mode<synchronous>, transform_indices = @transform_3, window_bounds = array<i64: 1, 128>}, {transform_indices = @transform_4, window_bounds = array<i64: 512, 128>}, {transform_indices = @transform_5, window_bounds = array<i64: 512, 128>}]} {
    %c0 = arith.constant 0 : index
    %c0_0 = arith.constant 0 : index
    %0 = vector.load %arg1[%c0, %c0_0] : memref<512x72xbf16, #tpu.memory_space<vmem>>, vector<512x72xbf16>
    %c0_1 = arith.constant 0 : index
    %c0_2 = arith.constant 0 : index
    %1 = vector.load %arg2[%c0_1, %c0_2] : memref<72x128xbf16, #tpu.memory_space<vmem>>, vector<72x128xbf16>
    %cst = arith.constant dense<0.000000e+00> : vector<512x128xf32>
    %2 = tpu.matmul %0, %1, %cst {dimension_numbers = #tpu.dot_dimension_numbers<[1], [0], [0], [1], [0, 0, 1, 1], [], []>} : vector<512x72xbf16>, vector<72x128xbf16>, vector<512x128xf32> -> vector<512x128xf32>
    %c0_3 = arith.constant 0 : index
    %c0_4 = arith.constant 0 : index
    %3 = vector.load %arg3[%c0_3, %c0_4] : memref<1x128xf32, #tpu.memory_space<vmem>>, vector<1x128xf32>
    %4 = vector.broadcast %3 : vector<1x128xf32> to vector<512x128xf32>
    %5 = arith.mulf %2, %4 : vector<512x128xf32>
    %c0_5 = arith.constant 0 : index
    %c0_6 = arith.constant 0 : index
    %6 = vector.load %arg4[%c0_5, %c0_6] : memref<1x128xf32, #tpu.memory_space<vmem>>, vector<1x128xf32>
    %7 = vector.broadcast %6 : vector<1x128xf32> to vector<512x128xf32>
    %8 = arith.addf %5, %7 : vector<512x128xf32>
    %c0_7 = arith.constant 0 : index
    %c0_8 = arith.constant 0 : index
    %9 = vector.load %arg5[%c0_7, %c0_8] : memref<512x128xbf16, #tpu.memory_space<vmem>>, vector<512x128xbf16>
    %10 = arith.extf %9 : vector<512x128xbf16> to vector<512x128xf32>
    %11 = arith.addf %8, %10 : vector<512x128xf32>
    %cst_9 = arith.constant 0.000000e+00 : f32
    %12 = vector.broadcast %cst_9 : f32 to vector<512x128xf32>
    %13 = arith.maximumf %11, %12 : vector<512x128xf32>
    %c0_10 = arith.constant 0 : index
    %c0_11 = arith.constant 0 : index
    %14 = vector.load %arg6[%c0_10, %c0_11] : memref<512x128xf32, #tpu.memory_space<vmem>>, vector<512x128xf32>
    tpu.vector_store %arg6[%c0_10, %c0_11], %13 {strides = array<i32>} : memref<512x128xf32, #tpu.memory_space<vmem>>, vector<512x128xf32>,
    return
  }
  func.func @transform_0(%arg0: i32) -> (i32, i32) {
    %c0_i32 = arith.constant 0 : i32
    %c0_i32_0 = arith.constant 0 : i32
    return %arg0, %c0_i32 : i32, i32
  }
  func.func @transform_1(%arg0: i32) -> (i32, i32) {
    %c0_i32 = arith.constant 0 : i32
    %c0_i32_0 = arith.constant 0 : i32
    %c0_i32_1 = arith.constant 0 : i32
    return %c0_i32, %c0_i32_0 : i32, i32
  }
  func.func @transform_2(%arg0: i32) -> (i32, i32) {
    %c0_i32 = arith.constant 0 : i32
    %c0_i32_0 = arith.constant 0 : i32
    %c0_i32_1 = arith.constant 0 : i32
    return %c0_i32, %c0_i32_0 : i32, i32
  }
  func.func @transform_3(%arg0: i32) -> (i32, i32) {
    %c0_i32 = arith.constant 0 : i32
    %c0_i32_0 = arith.constant 0 : i32
    %c0_i32_1 = arith.constant 0 : i32
    return %c0_i32, %c0_i32_0 : i32, i32
  }
  func.func @transform_4(%arg0: i32) -> (i32, i32) {
    %c0_i32 = arith.constant 0 : i32
    %c0_i32_0 = arith.constant 0 : i32
    return %arg0, %c0_i32 : i32, i32
  }
  func.func @transform_5(%arg0: i32) -> (i32, i32) {
    %c0_i32 = arith.constant 0 : i32
    %c0_i32_0 = arith.constant 0 : i32
    return %arg0, %c0_i32 : i32, i32
  }
}

</mosaic_0001>

<llo_original>
// kernel: forward.2
$region0: #{forward.2}
  #allocation0 [shape = 'u32[]', space=smem, size = 0x4, offset = 0x4, fixed_abs, tag = 'smem constant byte address 0x4 - core index']
  #allocation1 [shape = 'u32[72,128]{1,0:T(1,128)}', space=vmem, size = 0x9000, scoped, tag = 'internal scratch']
  %s0 = inlined_call_operand.vmem [shape: bf16[512,36], index: 0, kind: input, shape index: {}]
  %s1 = inlined_call_operand.vmem [shape: bf16[36,128], index: 1, kind: input, shape index: {}]
  %s2 = inlined_call_operand.vmem [shape: f32[1,128], index: 2, kind: input, shape index: {}]
  %s3 = inlined_call_operand.vmem [shape: f32[1,128], index: 3, kind: input, shape index: {}]
  %s4 = inlined_call_operand.vmem [shape: bf16[512,128], index: 4, kind: output, shape index: {}]
  %s5 = sld [smem:[#allocation0]]
  $region26: #{forward.2} parent=0
    _
  %s7 = ssub.s32 1, %s5
  %s8 = scalar_select 0, %s7, %s5
  // Predicated region
  $region2: #{forward.2} parent=0 // pred_check
    _
  $region3: #{forward.2} parent=0 // pred_check_branch
    %10 = sbr.rel (0) target = $region5
  $region4: #{forward.2} parent=0 // pred_region
    _
  $region5: #{forward.2} parent=0 // pred_fallthru
    _
  // Predicated region
  $region6: #{forward.2} parent=0 // pred_check
    _
  $region7: #{forward.2} parent=0 // pred_check_branch
    %12 = sbr.rel (0) target = $region9
  $region8: #{forward.2} parent=0 // pred_region
    _
  $region9: #{forward.2} parent=0 // pred_fallthru
    _
  // Predicated region
  $region10: #{forward.2} parent=0 // pred_check
    _
  $region11: #{forward.2} parent=0 // pred_check_branch
    %14 = sbr.rel (0) target = $region13
  $region12: #{forward.2} parent=0 // pred_region
    _
  $region13: #{forward.2} parent=0 // pred_fallthru
    _
  // Predicated region
  $region14: #{forward.2} parent=0 // pred_check
    _
  $region15: #{forward.2} parent=0 // pred_check_branch
    %16 = sbr.rel (0) target = $region17
  $region16: #{forward.2} parent=0 // pred_region
    _
  $region17: #{forward.2} parent=0 // pred_fallthru
    _
  %v18 = vld [vmem:[%s0] sm:$0xf]
  %v19 = vld [vmem:[%s0 + $0x4] sm:$0xf]
  %v20 = vld [vmem:[%s0 + $0x8] sm:$0xf]
  %v21 = vld [vmem:[%s0 + $0xc] sm:$0xf]
  %v22 = vld [vmem:[%s0 + $0x10] sm:$0xf]
  %v23 = vld [vmem:[%s0 + $0x14] sm:$0xf]
  %v24 = vld [vmem:[%s0 + $0x18] sm:$0xf]
  %v25 = vld [vmem:[%s0 + $0x1c] sm:$0xf]
  %v26 = vld [vmem:[%s0 + $0x20] sm:$0xf]
  %v27 = vld [vmem:[%s0 + $0x24] sm:$0xf]
  %v28 = vld [vmem:[%s0 + $0x28] sm:$0xf]
  %v29 = vld [vmem:[%s0 + $0x2c] sm:$0xf]
  %v30 = vld [vmem:[%s0 + $0x30] sm:$0xf]
  %v31 = vld [vmem:[%s0 + $0x34] sm:$0xf]
  %v32 = vld [vmem:[%s0 + $0x38] sm:$0xf]
  %v33 = vld [vmem:[%s0 + $0x3c] sm:$0xf]
  %v34 = vld [vmem:[%s0 + $0x40] sm:$0xf]
  %v35 = vld [vmem:[%s0 + $0x44] sm:$0xf]
  %v36 = vld [vmem:[%s0 + $0x48] sm:$0xf]
  %v37 = vld [vmem:[%s0 + $0x4c] sm:$0xf]
  %v38 = vld [vmem:[%s0 + $0x50] sm:$0xf]
  %v39 = vld [vmem:[%s0 + $0x54] sm:$0xf]
  %v40 = vld [vmem:[%s0 + $0x58] sm:$0xf]
  %v41 = vld [vmem:[%s0 + $0x5c] sm:$0xf]
  %v42 = vld [vmem:[%s0 + $0x60] sm:$0xf]
  %v43 = vld [vmem:[%s0 + $0x64] sm:$0xf]
  %v44 = vld [vmem:[%s0 + $0x68] sm:$0xf]
  %v45 = vld [vmem:[%s0 + $0x6c] sm:$0xf]
  %v46 = vld [vmem:[%s0 + $0x70] sm:$0xf]
  %v47 = vld [vmem:[%s0 + $0x74] sm:$0xf]
  %v48 = vld [vmem:[%s0 + $0x78] sm:$0xf]
  %v49 = vld [vmem:[%s0 + $0x7c] sm:$0xf]
  %v50 = vld [vmem:[%s0 + $0x80] sm:$0xf]
  %v51 = vld [vmem:[%s0 + $0x84] sm:$0xf]
  %v52 = vld [vmem:[%s0 + $0x88] sm:$0xf]
  %v53 = vld [vmem:[%s0 + $0x8c] sm:$0xf]
  %v54 = vld [vmem:[%s0 + $0x90] sm:$0xf]
  %v55 = vld [vmem:[%s0 + $0x94] sm:$0xf]
  %v56 = vld [vmem:[%s0 + $0x98] sm:$0xf]
  %v57 = vld [vmem:[%s0 + $0x9c] sm:$0xf]
  %v58 = vld [vmem:[%s0 + $0xa0] sm:$0xf]
  %v59 = vld [vmem:[%s0 + $0xa4] sm:$0xf]
  %v60 = vld [vmem:[%s0 + $0xa8] sm:$0xf]
  %v61 = vld [vmem:[%s0 + $0xac] sm:$0xf]
  %v62 = vld [vmem:[%s0 + $0xb0] sm:$0xf]
  %v63 = vld [vmem:[%s0 + $0xb4] sm:$0xf]
  %v64 = vld [vmem:[%s0 + $0xb8] sm:$0xf]
  %v65 = vld [vmem:[%s0 + $0xbc] sm:$0xf]
  %v66 = vld [vmem:[%s0 + $0xc0] sm:$0xf]
  %v67 = vld [vmem:[%s0 + $0xc4] sm:$0xf]
  %v68 = vld [vmem:[%s0 + $0xc8] sm:$0xf]
  %v69 = vld [vmem:[%s0 + $0xcc] sm:$0xf]
  %v70 = vld [vmem:[%s0 + $0xd0] sm:$0xf]
  %v71 = vld [vmem:[%s0 + $0xd4] sm:$0xf]
  %v72 = vld [vmem:[%s0 + $0xd8] sm:$0xf]
  %v73 = vld [vmem:[%s0 + $0xdc] sm:$0xf]
  %v74 = vld [vmem:[%s0 + $0xe0] sm:$0xf]
  %v75 = vld [vmem:[%s0 + $0xe4] sm:$0xf]
  %v76 = vld [vmem:[%s0 + $0xe8] sm:$0xf]
  %v77 = vld [vmem:[%s0 + $0xec] sm:$0xf]
  %v78 = vld [vmem:[%s0 + $0xf0] sm:$0xf]
  %v79 = vld [vmem:[%s0 + $0xf4] sm:$0xf]
  %v80 = vld [vmem:[%s0 + $0xf8] sm:$0xf]
  %v81 = vld [vmem:[%s0 + $0xfc] sm:$0xf]
  %v82 = vld [vmem:[%s1] sm:$0xf]
  %v83 = vld [vmem:[%s1 + $0x4] sm:$0xf]
  %v84 = vld [vmem:[%s1 + $0x8] sm:$0xf]
  %v85 = vld [vmem:[%s1 + $0xc] sm:$0xf]
  %v86 = vld [vmem:[%s1 + $0x10] sm:$0x3]
  %v151 = vunpack.c.l.b16 %v18
  %v152 = vunpack.c.l.b16 %v19
  %v153 = vunpack.c.l.b16 %v20
  %v154 = vunpack.c.l.b16 %v21
  %v155 = vunpack.c.l.b16 %v22
  %v156 = vunpack.c.l.b16 %v23
  %v157 = vunpack.c.l.b16 %v24
  %v158 = vunpack.c.l.b16 %v25
  %v159 = vunpack.c.l.b16 %v26
  %v160 = vunpack.c.l.b16 %v27
  %v161 = vunpack.c.l.b16 %v28
  %v162 = vunpack.c.l.b16 %v29
  %v163 = vunpack.c.l.b16 %v30
  %v164 = vunpack.c.l.b16 %v31
  %v165 = vunpack.c.l.b16 %v32
  %v166 = vunpack.c.l.b16 %v33
  %v167 = vunpack.c.l.b16 %v34
  %v168 = vunpack.c.l.b16 %v35
  %v169 = vunpack.c.l.b16 %v36
  %v170 = vunpack.c.l.b16 %v37
  %v171 = vunpack.c.l.b16 %v38
  %v172 = vunpack.c.l.b16 %v39
  %v173 = vunpack.c.l.b16 %v40
  %v174 = vunpack.c.l.b16 %v41
  %v175 = vunpack.c.l.b16 %v42
  %v176 = vunpack.c.l.b16 %v43
  %v177 = vunpack.c.l.b16 %v44
  %v178 = vunpack.c.l.b16 %v45
  %v179 = vunpack.c.l.b16 %v46
  %v180 = vunpack.c.l.b16 %v47
  %v181 = vunpack.c.l.b16 %v48
  %v182 = vunpack.c.l.b16 %v49
  %v183 = vunpack.c.l.b16 %v50
  %v184 = vunpack.c.l.b16 %v51
  %v185 = vunpack.c.l.b16 %v52
  %v186 = vunpack.c.l.b16 %v53
  %v187 = vunpack.c.l.b16 %v54
  %v188 = vunpack.c.l.b16 %v55
  %v189 = vunpack.c.l.b16 %v56
  %v190 = vunpack.c.l.b16 %v57
  %v191 = vunpack.c.l.b16 %v58
  %v192 = vunpack.c.l.b16 %v59
  %v193 = vunpack.c.l.b16 %v60
  %v194 = vunpack.c.l.b16 %v61
  %v195 = vunpack.c.l.b16 %v62
  %v196 = vunpack.c.l.b16 %v63
  %v197 = vunpack.c.l.b16 %v64
  %v198 = vunpack.c.l.b16 %v65
  %v199 = vunpack.c.l.b16 %v66
  %v200 = vunpack.c.l.b16 %v67
  %v201 = vunpack.c.l.b16 %v68
  %v202 = vunpack.c.l.b16 %v69
  %v203 = vunpack.c.l.b16 %v70
  %v204 = vunpack.c.l.b16 %v71
  %v205 = vunpack.c.l.b16 %v72
  %v206 = vunpack.c.l.b16 %v73
  %v207 = vunpack.c.l.b16 %v74
  %v208 = vunpack.c.l.b16 %v75
  %v209 = vunpack.c.l.b16 %v76
  %v210 = vunpack.c.l.b16 %v77
  %v211 = vunpack.c.l.b16 %v78
  %v212 = vunpack.c.l.b16 %v79
  %v213 = vunpack.c.l.b16 %v80
  %v214 = vunpack.c.l.b16 %v81
  %v215 = vpack.c.b16 %v152, %v151
  %v216 = vpack.c.b16 %v154, %v153
  %v217 = vpack.c.b16 %v156, %v155
  %v218 = vpack.c.b16 %v158, %v157
  %v219 = vpack.c.b16 %v160, %v159
  %v220 = vpack.c.b16 %v162, %v161
  %v221 = vpack.c.b16 %v164, %v163
  %v222 = vpack.c.b16 %v166, %v165
  %v223 = vpack.c.b16 %v168, %v167
  %v224 = vpack.c.b16 %v170, %v169
  %v225 = vpack.c.b16 %v172, %v171
  %v226 = vpack.c.b16 %v174, %v173
  %v227 = vpack.c.b16 %v176, %v175
  %v228 = vpack.c.b16 %v178, %v177
  %v229 = vpack.c.b16 %v180, %v179
  %v230 = vpack.c.b16 %v182, %v181
  %v231 = vpack.c.b16 %v184, %v183
  %v232 = vpack.c.b16 %v186, %v185
  %v233 = vpack.c.b16 %v188, %v187
  %v234 = vpack.c.b16 %v190, %v189
  %v235 = vpack.c.b16 %v192, %v191
  %v236 = vpack.c.b16 %v194, %v193
  %v237 = vpack.c.b16 %v196, %v195
  %v238 = vpack.c.b16 %v198, %v197
  %v239 = vpack.c.b16 %v200, %v199
  %v240 = vpack.c.b16 %v202, %v201
  %v241 = vpack.c.b16 %v204, %v203
  %v242 = vpack.c.b16 %v206, %v205
  %v243 = vpack.c.b16 %v208, %v207
  %v244 = vpack.c.b16 %v210, %v209
  %v245 = vpack.c.b16 %v212, %v211
  %v246 = vpack.c.b16 %v214, %v213
  %v252 = vunpack.c.l.b16 %v82
  %v253 = vunpack.c.l.b16 %v83
  %v254 = vunpack.c.l.b16 %v84
  %v255 = vunpack.c.l.b16 %v85
  %v256 = vunpack.c.l.b16 %v86
  %v257 = vpack.c.b16 %v253, %v252
  %v258 = vpack.c.b16 %v255, %v254
  %v259 = vpack.c.b16 %v256, %v256
  %vm262 = vcmask 293888
  %v264 = vsel %vm262, %v215, 0
  %v267 = vsel %vm262, %v216, 0
  %v270 = vsel %vm262, %v217, 0
  %v273 = vsel %vm262, %v218, 0
  %v276 = vsel %vm262, %v219, 0
  %v279 = vsel %vm262, %v220, 0
  %v282 = vsel %vm262, %v221, 0
  %v285 = vsel %vm262, %v222, 0
  %v288 = vsel %vm262, %v223, 0
  %v291 = vsel %vm262, %v224, 0
  %v294 = vsel %vm262, %v225, 0
  %v297 = vsel %vm262, %v226, 0
  %v300 = vsel %vm262, %v227, 0
  %v303 = vsel %vm262, %v228, 0
  %v306 = vsel %vm262, %v229, 0
  %v309 = vsel %vm262, %v230, 0
  %v312 = vsel %vm262, %v231, 0
  %v315 = vsel %vm262, %v232, 0
  %v318 = vsel %vm262, %v233, 0
  %v321 = vsel %vm262, %v234, 0
  %v324 = vsel %vm262, %v235, 0
  %v327 = vsel %vm262, %v236, 0
  %v330 = vsel %vm262, %v237, 0
  %v333 = vsel %vm262, %v238, 0
  %v336 = vsel %vm262, %v239, 0
  %v339 = vsel %vm262, %v240, 0
  %v342 = vsel %vm262, %v241, 0
  %v345 = vsel %vm262, %v242, 0
  %v348 = vsel %vm262, %v243, 0
  %v351 = vsel %vm262, %v244, 0
  %v354 = vsel %vm262, %v245, 0
  %v357 = vsel %vm262, %v246, 0
  %vm359 = vcmask 1041408
  %v361 = vsel %vm359, %v259, 0
  %363 = vmatpush.bf16.msra.mxu0 0
  %364 = vmatpush.bf16.msra.mxu0 0
  %365 = vmatpush.bf16.msra.mxu0 0
  %366 = vmatpush.bf16.msra.mxu0 0
  %367 = vmatpush.bf16.msra.mxu0 0
  %368 = vmatpush.bf16.msra.mxu0 %v361
  %369 = vmatpush.bf16.msra.mxu0 %v258
  %370 = vmatpush.bf16.msra.mxu0 %v257
  %371 = vmatmul.bf16.gmra.mxu0 %v264
  %v372 = vpop.f32.mrf.mxu0
  %v373 = vadd.f32 0.0, %v372
  %v374 = vpop.f32.mrf.mxu0
  %v375 = vadd.f32 0.0, %v374
  %376 = vmatmul.bf16.gmra.mxu0 %v267
  %v377 = vpop.f32.mrf.mxu0
  %v378 = vadd.f32 0.0, %v377
  %v379 = vpop.f32.mrf.mxu0
  %v380 = vadd.f32 0.0, %v379
  %381 = vmatmul.bf16.gmra.mxu0 %v270
  %v382 = vpop.f32.mrf.mxu0
  %v383 = vadd.f32 0.0, %v382
  %v384 = vpop.f32.mrf.mxu0
  %v385 = vadd.f32 0.0, %v384
  %386 = vmatmul.bf16.gmra.mxu0 %v273
  %v387 = vpop.f32.mrf.mxu0
  %v388 = vadd.f32 0.0, %v387
  %v389 = vpop.f32.mrf.mxu0
  %v390 = vadd.f32 0.0, %v389
  %391 = vmatmul.bf16.gmra.mxu0 %v276
  %v392 = vpop.f32.mrf.mxu0
  %v393 = vadd.f32 0.0, %v392
  %v394 = vpop.f32.mrf.mxu0
  %v395 = vadd.f32 0.0, %v394
  %396 = vmatmul.bf16.gmra.mxu0 %v279
  %v397 = vpop.f32.mrf.mxu0
  %v398 = vadd.f32 0.0, %v397
  %v399 = vpop.f32.mrf.mxu0
  %v400 = vadd.f32 0.0, %v399
  %401 = vmatmul.bf16.gmra.mxu0 %v282
  %v402 = vpop.f32.mrf.mxu0
  %v403 = vadd.f32 0.0, %v402
  %v404 = vpop.f32.mrf.mxu0
  %v405 = vadd.f32 0.0, %v404
  %406 = vmatmul.bf16.gmra.mxu0 %v285
  %v407 = vpop.f32.mrf.mxu0
  %v408 = vadd.f32 0.0, %v407
  %v409 = vpop.f32.mrf.mxu0
  %v410 = vadd.f32 0.0, %v409
  %411 = vmatmul.bf16.gmra.mxu0 %v288
  %v412 = vpop.f32.mrf.mxu0
  %v413 = vadd.f32 0.0, %v412
  %v414 = vpop.f32.mrf.mxu0
  %v415 = vadd.f32 0.0, %v414
  %416 = vmatmul.bf16.gmra.mxu0 %v291
  %v417 = vpop.f32.mrf.mxu0
  %v418 = vadd.f32 0.0, %v417
  %v419 = vpop.f32.mrf.mxu0
  %v420 = vadd.f32 0.0, %v419
  %421 = vmatmul.bf16.gmra.mxu0 %v294
  %v422 = vpop.f32.mrf.mxu0
  %v423 = vadd.f32 0.0, %v422
  %v424 = vpop.f32.mrf.mxu0
  %v425 = vadd.f32 0.0, %v424
  %426 = vmatmul.bf16.gmra.mxu0 %v297
  %v427 = vpop.f32.mrf.mxu0
  %v428 = vadd.f32 0.0, %v427
  %v429 = vpop.f32.mrf.mxu0
  %v430 = vadd.f32 0.0, %v429
  %431 = vmatmul.bf16.gmra.mxu0 %v300
  %v432 = vpop.f32.mrf.mxu0
  %v433 = vadd.f32 0.0, %v432
  %v434 = vpop.f32.mrf.mxu0
  %v435 = vadd.f32 0.0, %v434
  %436 = vmatmul.bf16.gmra.mxu0 %v303
  %v437 = vpop.f32.mrf.mxu0
  %v438 = vadd.f32 0.0, %v437
  %v439 = vpop.f32.mrf.mxu0
  %v440 = vadd.f32 0.0, %v439
  %441 = vmatmul.bf16.gmra.mxu0 %v306
  %v442 = vpop.f32.mrf.mxu0
  %v443 = vadd.f32 0.0, %v442
  %v444 = vpop.f32.mrf.mxu0
  %v445 = vadd.f32 0.0, %v444
  %446 = vmatmul.bf16.gmra.mxu0 %v309
  %v447 = vpop.f32.mrf.mxu0
  %v448 = vadd.f32 0.0, %v447
  %v449 = vpop.f32.mrf.mxu0
  %v450 = vadd.f32 0.0, %v449
  %451 = vmatmul.bf16.gmra.mxu0 %v312
  %v452 = vpop.f32.mrf.mxu0
  %v453 = vadd.f32 0.0, %v452
  %v454 = vpop.f32.mrf.mxu0
  %v455 = vadd.f32 0.0, %v454
  %456 = vmatmul.bf16.gmra.mxu0 %v315
  %v457 = vpop.f32.mrf.mxu0
  %v458 = vadd.f32 0.0, %v457
  %v459 = vpop.f32.mrf.mxu0
  %v460 = vadd.f32 0.0, %v459
  %461 = vmatmul.bf16.gmra.mxu0 %v318
  %v462 = vpop.f32.mrf.mxu0
  %v463 = vadd.f32 0.0, %v462
  %v464 = vpop.f32.mrf.mxu0
  %v465 = vadd.f32 0.0, %v464
  %466 = vmatmul.bf16.gmra.mxu0 %v321
  %v467 = vpop.f32.mrf.mxu0
  %v468 = vadd.f32 0.0, %v467
  %v469 = vpop.f32.mrf.mxu0
  %v470 = vadd.f32 0.0, %v469
  %471 = vmatmul.bf16.gmra.mxu0 %v324
  %v472 = vpop.f32.mrf.mxu0
  %v473 = vadd.f32 0.0, %v472
  %v474 = vpop.f32.mrf.mxu0
  %v475 = vadd.f32 0.0, %v474
  %476 = vmatmul.bf16.gmra.mxu0 %v327
  %v477 = vpop.f32.mrf.mxu0
  %v478 = vadd.f32 0.0, %v477
  %v479 = vpop.f32.mrf.mxu0
  %v480 = vadd.f32 0.0, %v479
  %481 = vmatmul.bf16.gmra.mxu0 %v330
  %v482 = vpop.f32.mrf.mxu0
  %v483 = vadd.f32 0.0, %v482
  %v484 = vpop.f32.mrf.mxu0
  %v485 = vadd.f32 0.0, %v484
  %486 = vmatmul.bf16.gmra.mxu0 %v333
  %v487 = vpop.f32.mrf.mxu0
  %v488 = vadd.f32 0.0, %v487
  %v489 = vpop.f32.mrf.mxu0
  %v490 = vadd.f32 0.0, %v489
  %491 = vmatmul.bf16.gmra.mxu0 %v336
  %v492 = vpop.f32.mrf.mxu0
  %v493 = vadd.f32 0.0, %v492
  %v494 = vpop.f32.mrf.mxu0
  %v495 = vadd.f32 0.0, %v494
  %496 = vmatmul.bf16.gmra.mxu0 %v339
  %v497 = vpop.f32.mrf.mxu0
  %v498 = vadd.f32 0.0, %v497
  %v499 = vpop.f32.mrf.mxu0
  %v500 = vadd.f32 0.0, %v499
  %501 = vmatmul.bf16.gmra.mxu0 %v342
  %v502 = vpop.f32.mrf.mxu0
  %v503 = vadd.f32 0.0, %v502
  %v504 = vpop.f32.mrf.mxu0
  %v505 = vadd.f32 0.0, %v504
  %506 = vmatmul.bf16.gmra.mxu0 %v345
  %v507 = vpop.f32.mrf.mxu0
  %v508 = vadd.f32 0.0, %v507
  %v509 = vpop.f32.mrf.mxu0
  %v510 = vadd.f32 0.0, %v509
  %511 = vmatmul.bf16.gmra.mxu0 %v348
  %v512 = vpop.f32.mrf.mxu0
  %v513 = vadd.f32 0.0, %v512
  %v514 = vpop.f32.mrf.mxu0
  %v515 = vadd.f32 0.0, %v514
  %516 = vmatmul.bf16.gmra.mxu0 %v351
  %v517 = vpop.f32.mrf.mxu0
  %v518 = vadd.f32 0.0, %v517
  %v519 = vpop.f32.mrf.mxu0
  %v520 = vadd.f32 0.0, %v519
  %521 = vmatmul.bf16.gmra.mxu0 %v354
  %v522 = vpop.f32.mrf.mxu0
  %v523 = vadd.f32 0.0, %v522
  %v524 = vpop.f32.mrf.mxu0
  %v525 = vadd.f32 0.0, %v524
  %526 = vmatmul.bf16.gmra.mxu0 %v357
  %v527 = vpop.f32.mrf.mxu0
  %v528 = vadd.f32 0.0, %v527
  %v529 = vpop.f32.mrf.mxu0
  %v530 = vadd.f32 0.0, %v529
  %531 = vdwg.mxu0
  %v532 = vld [vmem:[%s2] sm:$0x1]
  %v534 = vperm.slane %v532, 0
  %v536 = vmul.f32 %v373, %v534
  %v537 = vmul.f32 %v375, %v534
  %v538 = vmul.f32 %v378, %v534
  %v539 = vmul.f32 %v380, %v534
  %v540 = vmul.f32 %v383, %v534
  %v541 = vmul.f32 %v385, %v534
  %v542 = vmul.f32 %v388, %v534
  %v543 = vmul.f32 %v390, %v534
  %v544 = vmul.f32 %v393, %v534
  %v545 = vmul.f32 %v395, %v534
  %v546 = vmul.f32 %v398, %v534
  %v547 = vmul.f32 %v400, %v534
  %v548 = vmul.f32 %v403, %v534
  %v549 = vmul.f32 %v405, %v534
  %v550 = vmul.f32 %v408, %v534
  %v551 = vmul.f32 %v410, %v534
  %v552 = vmul.f32 %v413, %v534
  %v553 = vmul.f32 %v415, %v534
  %v554 = vmul.f32 %v418, %v534
  %v555 = vmul.f32 %v420, %v534
  %v556 = vmul.f32 %v423, %v534
  %v557 = vmul.f32 %v425, %v534
  %v558 = vmul.f32 %v428, %v534
  %v559 = vmul.f32 %v430, %v534
  %v560 = vmul.f32 %v433, %v534
  %v561 = vmul.f32 %v435, %v534
  %v562 = vmul.f32 %v438, %v534
  %v563 = vmul.f32 %v440, %v534
  %v564 = vmul.f32 %v443, %v534
  %v565 = vmul.f32 %v445, %v534
  %v566 = vmul.f32 %v448, %v534
  %v567 = vmul.f32 %v450, %v534
  %v568 = vmul.f32 %v453, %v534
  %v569 = vmul.f32 %v455, %v534
  %v570 = vmul.f32 %v458, %v534
  %v571 = vmul.f32 %v460, %v534
  %v572 = vmul.f32 %v463, %v534
  %v573 = vmul.f32 %v465, %v534
  %v574 = vmul.f32 %v468, %v534
  %v575 = vmul.f32 %v470, %v534
  %v576 = vmul.f32 %v473, %v534
  %v577 = vmul.f32 %v475, %v534
  %v578 = vmul.f32 %v478, %v534
  %v579 = vmul.f32 %v480, %v534
  %v580 = vmul.f32 %v483, %v534
  %v581 = vmul.f32 %v485, %v534
  %v582 = vmul.f32 %v488, %v534
  %v583 = vmul.f32 %v490, %v534
  %v584 = vmul.f32 %v493, %v534
  %v585 = vmul.f32 %v495, %v534
  %v586 = vmul.f32 %v498, %v534
  %v587 = vmul.f32 %v500, %v534
  %v588 = vmul.f32 %v503, %v534
  %v589 = vmul.f32 %v505, %v534
  %v590 = vmul.f32 %v508, %v534
  %v591 = vmul.f32 %v510, %v534
  %v592 = vmul.f32 %v513, %v534
  %v593 = vmul.f32 %v515, %v534
  %v594 = vmul.f32 %v518, %v534
  %v595 = vmul.f32 %v520, %v534
  %v596 = vmul.f32 %v523, %v534
  %v597 = vmul.f32 %v525, %v534
  %v598 = vmul.f32 %v528, %v534
  %v599 = vmul.f32 %v530, %v534
  %v600 = vld [vmem:[%s3] sm:$0x1]
  %v602 = vperm.slane %v600, 0
  %v604 = vadd.f32 %v536, %v602
  %v605 = vadd.f32 %v537, %v602
  %v606 = vadd.f32 %v538, %v602
  %v607 = vadd.f32 %v539, %v602
  %v608 = vadd.f32 %v540, %v602
  %v609 = vadd.f32 %v541, %v602
  %v610 = vadd.f32 %v542, %v602
  %v611 = vadd.f32 %v543, %v602
  %v612 = vadd.f32 %v544, %v602
  %v613 = vadd.f32 %v545, %v602
  %v614 = vadd.f32 %v546, %v602
  %v615 = vadd.f32 %v547, %v602
  %v616 = vadd.f32 %v548, %v602
  %v617 = vadd.f32 %v549, %v602
  %v618 = vadd.f32 %v550, %v602
  %v619 = vadd.f32 %v551, %v602
  %v620 = vadd.f32 %v552, %v602
  %v621 = vadd.f32 %v553, %v602
  %v622 = vadd.f32 %v554, %v602
  %v623 = vadd.f32 %v555, %v602
  %v624 = vadd.f32 %v556, %v602
  %v625 = vadd.f32 %v557, %v602
  %v626 = vadd.f32 %v558, %v602
  %v627 = vadd.f32 %v559, %v602
  %v628 = vadd.f32 %v560, %v602
  %v629 = vadd.f32 %v561, %v602
  %v630 = vadd.f32 %v562, %v602
  %v631 = vadd.f32 %v563, %v602
  %v632 = vadd.f32 %v564, %v602
  %v633 = vadd.f32 %v565, %v602
  %v634 = vadd.f32 %v566, %v602
  %v635 = vadd.f32 %v567, %v602
  %v636 = vadd.f32 %v568, %v602
  %v637 = vadd.f32 %v569, %v602
  %v638 = vadd.f32 %v570, %v602
  %v639 = vadd.f32 %v571, %v602
  %v640 = vadd.f32 %v572, %v602
  %v641 = vadd.f32 %v573, %v602
  %v642 = vadd.f32 %v574, %v602
  %v643 = vadd.f32 %v575, %v602
  %v644 = vadd.f32 %v576, %v602
  %v645 = vadd.f32 %v577, %v602
  %v646 = vadd.f32 %v578, %v602
  %v647 = vadd.f32 %v579, %v602
  %v648 = vadd.f32 %v580, %v602
  %v649 = vadd.f32 %v581, %v602
  %v650 = vadd.f32 %v582, %v602
  %v651 = vadd.f32 %v583, %v602
  %v652 = vadd.f32 %v584, %v602
  %v653 = vadd.f32 %v585, %v602
  %v654 = vadd.f32 %v586, %v602
  %v655 = vadd.f32 %v587, %v602
  %v656 = vadd.f32 %v588, %v602
  %v657 = vadd.f32 %v589, %v602
  %v658 = vadd.f32 %v590, %v602
  %v659 = vadd.f32 %v591, %v602
  %v660 = vadd.f32 %v592, %v602
  %v661 = vadd.f32 %v593, %v602
  %v662 = vadd.f32 %v594, %v602
  %v663 = vadd.f32 %v595, %v602
  %v664 = vadd.f32 %v596, %v602
  %v665 = vadd.f32 %v597, %v602
  %v666 = vadd.f32 %v598, %v602
  %v667 = vadd.f32 %v599, %v602
  %v668 = vlaneseq
  %v669 = vand.u32 %v668, 127
  %vm670 = vcmp.lt.s32.totalorder %v669, 8
  %v671 = vmax.f32 %v604, 0.0
  %v672 = vmax.f32 %v605, 0.0
  %v673 = vmax.f32 %v606, 0.0
  %v674 = vmax.f32 %v607, 0.0
  %v675 = vmax.f32 %v608, 0.0
  %v676 = vmax.f32 %v609, 0.0
  %v677 = vmax.f32 %v610, 0.0
  %v678 = vmax.f32 %v611, 0.0
  %v679 = vmax.f32 %v612, 0.0
  %v680 = vmax.f32 %v613, 0.0
  %v681 = vmax.f32 %v614, 0.0
  %v682 = vmax.f32 %v615, 0.0
  %v683 = vmax.f32 %v616, 0.0
  %v684 = vmax.f32 %v617, 0.0
  %v685 = vmax.f32 %v618, 0.0
  %v686 = vmax.f32 %v619, 0.0
  %v687 = vmax.f32 %v620, 0.0
  %v688 = vmax.f32 %v621, 0.0
  %v689 = vmax.f32 %v622, 0.0
  %v690 = vmax.f32 %v623, 0.0
  %v691 = vmax.f32 %v624, 0.0
  %v692 = vmax.f32 %v625, 0.0
  %v693 = vmax.f32 %v626, 0.0
  %v694 = vmax.f32 %v627, 0.0
  %v695 = vmax.f32 %v628, 0.0
  %v696 = vmax.f32 %v629, 0.0
  %v697 = vmax.f32 %v630, 0.0
  %v698 = vmax.f32 %v631, 0.0
  %v699 = vmax.f32 %v632, 0.0
  %v700 = vmax.f32 %v633, 0.0
  %v701 = vmax.f32 %v634, 0.0
  %v702 = vmax.f32 %v635, 0.0
  %v703 = vmax.f32 %v636, 0.0
  %v704 = vmax.f32 %v637, 0.0
  %v705 = vmax.f32 %v638, 0.0
  %v706 = vmax.f32 %v639, 0.0
  %v707 = vmax.f32 %v640, 0.0
  %v708 = vmax.f32 %v641, 0.0
  %v709 = vmax.f32 %v642, 0.0
  %v710 = vmax.f32 %v643, 0.0
  %v711 = vmax.f32 %v644, 0.0
  %v712 = vmax.f32 %v645, 0.0
  %v713 = vmax.f32 %v646, 0.0
  %v714 = vmax.f32 %v647, 0.0
  %v715 = vmax.f32 %v648, 0.0
  %v716 = vmax.f32 %v649, 0.0
  %v717 = vmax.f32 %v650, 0.0
  %v718 = vmax.f32 %v651, 0.0
  %v719 = vmax.f32 %v652, 0.0
  %v720 = vmax.f32 %v653, 0.0
  %v721 = vmax.f32 %v654, 0.0
  %v722 = vmax.f32 %v655, 0.0
  %v723 = vmax.f32 %v656, 0.0
  %v724 = vmax.f32 %v657, 0.0
  %v725 = vmax.f32 %v658, 0.0
  %v726 = vmax.f32 %v659, 0.0
  %v727 = vmax.f32 %v660, 0.0
  %v728 = vmax.f32 %v661, 0.0
  %v729 = vmax.f32 %v662, 0.0
  %v730 = vmax.f32 %v663, 0.0
  %v731 = vmax.f32 %v664, 0.0
  %v732 = vmax.f32 %v665, 0.0
  %v733 = vmax.f32 %v666, 0.0
  %v734 = vmax.f32 %v667, 0.0
  %v735 = vsel %vm670, %v671, %v604
  %v736 = vsel %vm670, %v672, %v605
  %v737 = vsel %vm670, %v673, %v606
  %v738 = vsel %vm670, %v674, %v607
  %v739 = vsel %vm670, %v675, %v608
  %v740 = vsel %vm670, %v676, %v609
  %v741 = vsel %vm670, %v677, %v610
  %v742 = vsel %vm670, %v678, %v611
  %v743 = vsel %vm670, %v679, %v612
  %v744 = vsel %vm670, %v680, %v613
  %v745 = vsel %vm670, %v681, %v614
  %v746 = vsel %vm670, %v682, %v615
  %v747 = vsel %vm670, %v683, %v616
  %v748 = vsel %vm670, %v684, %v617
  %v749 = vsel %vm670, %v685, %v618
  %v750 = vsel %vm670, %v686, %v619
  %v751 = vsel %vm670, %v687, %v620
  %v752 = vsel %vm670, %v688, %v621
  %v753 = vsel %vm670, %v689, %v622
  %v754 = vsel %vm670, %v690, %v623
  %v755 = vsel %vm670, %v691, %v624
  %v756 = vsel %vm670, %v692, %v625
  %v757 = vsel %vm670, %v693, %v626
  %v758 = vsel %vm670, %v694, %v627
  %v759 = vsel %vm670, %v695, %v628
  %v760 = vsel %vm670, %v696, %v629
  %v761 = vsel %vm670, %v697, %v630
  %v762 = vsel %vm670, %v698, %v631
  %v763 = vsel %vm670, %v699, %v632
  %v764 = vsel %vm670, %v700, %v633
  %v765 = vsel %vm670, %v701, %v634
  %v766 = vsel %vm670, %v702, %v635
  %v767 = vsel %vm670, %v703, %v636
  %v768 = vsel %vm670, %v704, %v637
  %v769 = vsel %vm670, %v705, %v638
  %v770 = vsel %vm670, %v706, %v639
  %v771 = vsel %vm670, %v707, %v640
  %v772 = vsel %vm670, %v708, %v641
  %v773 = vsel %vm670, %v709, %v642
  %v774 = vsel %vm670, %v710, %v643
  %v775 = vsel %vm670, %v711, %v644
  %v776 = vsel %vm670, %v712, %v645
  %v777 = vsel %vm670, %v713, %v646
  %v778 = vsel %vm670, %v714, %v647
  %v779 = vsel %vm670, %v715, %v648
  %v780 = vsel %vm670, %v716, %v649
  %v781 = vsel %vm670, %v717, %v650
  %v782 = vsel %vm670, %v718, %v651
  %v783 = vsel %vm670, %v719, %v652
  %v784 = vsel %vm670, %v720, %v653
  %v785 = vsel %vm670, %v721, %v654
  %v786 = vsel %vm670, %v722, %v655
  %v787 = vsel %vm670, %v723, %v656
  %v788 = vsel %vm670, %v724, %v657
  %v789 = vsel %vm670, %v725, %v658
  %v790 = vsel %vm670, %v726, %v659
  %v791 = vsel %vm670, %v727, %v660
  %v792 = vsel %vm670, %v728, %v661
  %v793 = vsel %vm670, %v729, %v662
  %v794 = vsel %vm670, %v730, %v663
  %v795 = vsel %vm670, %v731, %v664
  %v796 = vsel %vm670, %v732, %v665
  %v797 = vsel %vm670, %v733, %v666
  %v798 = vsel %vm670, %v734, %v667
  %v799 = vpack.c.bf16 %v735, %v735
  %v800 = vpack.c.bf16 %v736, %v736
  %v801 = vpack.c.bf16 %v737, %v737
  %v802 = vpack.c.bf16 %v738, %v738
  %v803 = vpack.c.bf16 %v739, %v739
  %v804 = vpack.c.bf16 %v740, %v740
  %v805 = vpack.c.bf16 %v741, %v741
  %v806 = vpack.c.bf16 %v742, %v742
  %v807 = vpack.c.bf16 %v743, %v743
  %v808 = vpack.c.bf16 %v744, %v744
  %v809 = vpack.c.bf16 %v745, %v745
  %v810 = vpack.c.bf16 %v746, %v746
  %v811 = vpack.c.bf16 %v747, %v747
  %v812 = vpack.c.bf16 %v748, %v748
  %v813 = vpack.c.bf16 %v749, %v749
  %v814 = vpack.c.bf16 %v750, %v750
  %v815 = vpack.c.bf16 %v751, %v751
  %v816 = vpack.c.bf16 %v752, %v752
  %v817 = vpack.c.bf16 %v753, %v753
  %v818 = vpack.c.bf16 %v754, %v754
  %v819 = vpack.c.bf16 %v755, %v755
  %v820 = vpack.c.bf16 %v756, %v756
  %v821 = vpack.c.bf16 %v757, %v757
  %v822 = vpack.c.bf16 %v758, %v758
  %v823 = vpack.c.bf16 %v759, %v759
  %v824 = vpack.c.bf16 %v760, %v760
  %v825 = vpack.c.bf16 %v761, %v761
  %v826 = vpack.c.bf16 %v762, %v762
  %v827 = vpack.c.bf16 %v763, %v763
  %v828 = vpack.c.bf16 %v764, %v764
  %v829 = vpack.c.bf16 %v765, %v765
  %v830 = vpack.c.bf16 %v766, %v766
  %v831 = vpack.c.bf16 %v767, %v767
  %v832 = vpack.c.bf16 %v768, %v768
  %v833 = vpack.c.bf16 %v769, %v769
  %v834 = vpack.c.bf16 %v770, %v770
  %v835 = vpack.c.bf16 %v771, %v771
  %v836 = vpack.c.bf16 %v772, %v772
  %v837 = vpack.c.bf16 %v773, %v773
  %v838 = vpack.c.bf16 %v774, %v774
  %v839 = vpack.c.bf16 %v775, %v775
  %v840 = vpack.c.bf16 %v776, %v776
  %v841 = vpack.c.bf16 %v777, %v777
  %v842 = vpack.c.bf16 %v778, %v778
  %v843 = vpack.c.bf16 %v779, %v779
  %v844 = vpack.c.bf16 %v780, %v780
  %v845 = vpack.c.bf16 %v781, %v781
  %v846 = vpack.c.bf16 %v782, %v782
  %v847 = vpack.c.bf16 %v783, %v783
  %v848 = vpack.c.bf16 %v784, %v784
  %v849 = vpack.c.bf16 %v785, %v785
  %v850 = vpack.c.bf16 %v786, %v786
  %v851 = vpack.c.bf16 %v787, %v787
  %v852 = vpack.c.bf16 %v788, %v788
  %v853 = vpack.c.bf16 %v789, %v789
  %v854 = vpack.c.bf16 %v790, %v790
  %v855 = vpack.c.bf16 %v791, %v791
  %v856 = vpack.c.bf16 %v792, %v792
  %v857 = vpack.c.bf16 %v793, %v793
  %v858 = vpack.c.bf16 %v794, %v794
  %v859 = vpack.c.bf16 %v795, %v795
  %v860 = vpack.c.bf16 %v796, %v796
  %v861 = vpack.c.bf16 %v797, %v797
  %v862 = vpack.c.bf16 %v798, %v798
  %863 = vst [vmem:[%s4] sm:$0xf] %v799
  %864 = vst [vmem:[%s4 + $0x4] sm:$0xf] %v800
  %865 = vst [vmem:[%s4 + $0x8] sm:$0xf] %v801
  %866 = vst [vmem:[%s4 + $0xc] sm:$0xf] %v802
  %867 = vst [vmem:[%s4 + $0x10] sm:$0xf] %v803
  %868 = vst [vmem:[%s4 + $0x14] sm:$0xf] %v804
  %869 = vst [vmem:[%s4 + $0x18] sm:$0xf] %v805
  %870 = vst [vmem:[%s4 + $0x1c] sm:$0xf] %v806
  %871 = vst [vmem:[%s4 + $0x20] sm:$0xf] %v807
  %872 = vst [vmem:[%s4 + $0x24] sm:$0xf] %v808
  %873 = vst [vmem:[%s4 + $0x28] sm:$0xf] %v809
  %874 = vst [vmem:[%s4 + $0x2c] sm:$0xf] %v810
  %875 = vst [vmem:[%s4 + $0x30] sm:$0xf] %v811
  %876 = vst [vmem:[%s4 + $0x34] sm:$0xf] %v812
  %877 = vst [vmem:[%s4 + $0x38] sm:$0xf] %v813
  %878 = vst [vmem:[%s4 + $0x3c] sm:$0xf] %v814
  %879 = vst [vmem:[%s4 + $0x40] sm:$0xf] %v815
  %880 = vst [vmem:[%s4 + $0x44] sm:$0xf] %v816
  %881 = vst [vmem:[%s4 + $0x48] sm:$0xf] %v817
  %882 = vst [vmem:[%s4 + $0x4c] sm:$0xf] %v818
  %883 = vst [vmem:[%s4 + $0x50] sm:$0xf] %v819
  %884 = vst [vmem:[%s4 + $0x54] sm:$0xf] %v820
  %885 = vst [vmem:[%s4 + $0x58] sm:$0xf] %v821
  %886 = vst [vmem:[%s4 + $0x5c] sm:$0xf] %v822
  %887 = vst [vmem:[%s4 + $0x60] sm:$0xf] %v823
  %888 = vst [vmem:[%s4 + $0x64] sm:$0xf] %v824
  %889 = vst [vmem:[%s4 + $0x68] sm:$0xf] %v825
  %890 = vst [vmem:[%s4 + $0x6c] sm:$0xf] %v826
  %891 = vst [vmem:[%s4 + $0x70] sm:$0xf] %v827
  %892 = vst [vmem:[%s4 + $0x74] sm:$0xf] %v828
  %893 = vst [vmem:[%s4 + $0x78] sm:$0xf] %v829
  %894 = vst [vmem:[%s4 + $0x7c] sm:$0xf] %v830
  %895 = vst [vmem:[%s4 + $0x80] sm:$0xf] %v831
  %896 = vst [vmem:[%s4 + $0x84] sm:$0xf] %v832
  %897 = vst [vmem:[%s4 + $0x88] sm:$0xf] %v833
  %898 = vst [vmem:[%s4 + $0x8c] sm:$0xf] %v834
  %899 = vst [vmem:[%s4 + $0x90] sm:$0xf] %v835
  %900 = vst [vmem:[%s4 + $0x94] sm:$0xf] %v836
  %901 = vst [vmem:[%s4 + $0x98] sm:$0xf] %v837
  %902 = vst [vmem:[%s4 + $0x9c] sm:$0xf] %v838
  %903 = vst [vmem:[%s4 + $0xa0] sm:$0xf] %v839
  %904 = vst [vmem:[%s4 + $0xa4] sm:$0xf] %v840
  %905 = vst [vmem:[%s4 + $0xa8] sm:$0xf] %v841
  %906 = vst [vmem:[%s4 + $0xac] sm:$0xf] %v842
  %907 = vst [vmem:[%s4 + $0xb0] sm:$0xf] %v843
  %908 = vst [vmem:[%s4 + $0xb4] sm:$0xf] %v844
  %909 = vst [vmem:[%s4 + $0xb8] sm:$0xf] %v845
  %910 = vst [vmem:[%s4 + $0xbc] sm:$0xf] %v846
  %911 = vst [vmem:[%s4 + $0xc0] sm:$0xf] %v847
  %912 = vst [vmem:[%s4 + $0xc4] sm:$0xf] %v848
  %913 = vst [vmem:[%s4 + $0xc8] sm:$0xf] %v849
  %914 = vst [vmem:[%s4 + $0xcc] sm:$0xf] %v850
  %915 = vst [vmem:[%s4 + $0xd0] sm:$0xf] %v851
  %916 = vst [vmem:[%s4 + $0xd4] sm:$0xf] %v852
  %917 = vst [vmem:[%s4 + $0xd8] sm:$0xf] %v853
  %918 = vst [vmem:[%s4 + $0xdc] sm:$0xf] %v854
  %919 = vst [vmem:[%s4 + $0xe0] sm:$0xf] %v855
  %920 = vst [vmem:[%s4 + $0xe4] sm:$0xf] %v856
  %921 = vst [vmem:[%s4 + $0xe8] sm:$0xf] %v857
  %922 = vst [vmem:[%s4 + $0xec] sm:$0xf] %v858
  %923 = vst [vmem:[%s4 + $0xf0] sm:$0xf] %v859
  %924 = vst [vmem:[%s4 + $0xf4] sm:$0xf] %v860
  %925 = vst [vmem:[%s4 + $0xf8] sm:$0xf] %v861
  %926 = vst [vmem:[%s4 + $0xfc] sm:$0xf] %v862
  // Predicated region
  $region18: #{forward.2} parent=0 // pred_check
    _
  $region19: #{forward.2} parent=0 // pred_check_branch
    %928 = sbr.rel (0) target = $region21
  $region20: #{forward.2} parent=0 // pred_region
    _
  $region21: #{forward.2} parent=0 // pred_fallthru
    _
  // Predicated region
  $region22: #{forward.2} parent=0 // pred_check
    _
  $region23: #{forward.2} parent=0 // pred_check_branch
    %930 = sbr.rel (0) target = $region25
  $region24: #{forward.2} parent=0 // pred_region
    _
  $region25: #{forward.2} parent=0 // pred_fallthru
    _

// kernel: forward.3
$region0: #{forward.3}
  #allocation0 [shape = 'u32[]', space=smem, size = 0x4, offset = 0x4, fixed_abs, tag = 'smem constant byte address 0x4 - core index']
  #allocation1 [shape = 'u32[72,128]{1,0:T(1,128)}', space=vmem, size = 0x9000, scoped, tag = 'internal scratch']
  %s0 = inlined_call_operand.vmem [shape: bf16[512,72], index: 0, kind: input, shape index: {}]
  %s1 = inlined_call_operand.vmem [shape: bf16[72,128], index: 1, kind: input, shape index: {}]
  %s2 = inlined_call_operand.vmem [shape: f32[1,128], index: 2, kind: input, shape index: {}]
  %s3 = inlined_call_operand.vmem [shape: f32[1,128], index: 3, kind: input, shape index: {}]
  %s4 = inlined_call_operand.vmem [shape: bf16[512,128], index: 4, kind: input, shape index: {}]
  %s5 = inlined_call_operand.vmem [shape: f32[512,128], index: 5, kind: output, shape index: {}]
  %s6 = sld [smem:[#allocation0]]
  $region30: #{forward.3} parent=0
    _
  %s8 = ssub.s32 1, %s6
  %s9 = scalar_select 0, %s8, %s6
  // Predicated region
  $region2: #{forward.3} parent=0 // pred_check
    _
  $region3: #{forward.3} parent=0 // pred_check_branch
    %11 = sbr.rel (0) target = $region5
  $region4: #{forward.3} parent=0 // pred_region
    _
  $region5: #{forward.3} parent=0 // pred_fallthru
    _
  // Predicated region
  $region6: #{forward.3} parent=0 // pred_check
    _
  $region7: #{forward.3} parent=0 // pred_check_branch
    %13 = sbr.rel (0) target = $region9
  $region8: #{forward.3} parent=0 // pred_region
    _
  $region9: #{forward.3} parent=0 // pred_fallthru
    _
  // Predicated region
  $region10: #{forward.3} parent=0 // pred_check
    _
  $region11: #{forward.3} parent=0 // pred_check_branch
    %15 = sbr.rel (0) target = $region13
  $region12: #{forward.3} parent=0 // pred_region
    _
  $region13: #{forward.3} parent=0 // pred_fallthru
    _
  // Predicated region
  $region14: #{forward.3} parent=0 // pred_check
    _
  $region15: #{forward.3} parent=0 // pred_check_branch
    %17 = sbr.rel (0) target = $region17
  $region16: #{forward.3} parent=0 // pred_region
    _
  $region17: #{forward.3} parent=0 // pred_fallthru
    _
  // Predicated region
  $region18: #{forward.3} parent=0 // pred_check
    _
  $region19: #{forward.3} parent=0 // pred_check_branch
    %19 = sbr.rel (0) target = $region21
  $region20: #{forward.3} parent=0 // pred_region
    _
  $region21: #{forward.3} parent=0 // pred_fallthru
    _
  %v21 = vld [vmem:[%s0] sm:$0xf]
  %v22 = vld [vmem:[%s0 + $0x4] sm:$0xf]
  %v23 = vld [vmem:[%s0 + $0x8] sm:$0xf]
  %v24 = vld [vmem:[%s0 + $0xc] sm:$0xf]
  %v25 = vld [vmem:[%s0 + $0x10] sm:$0xf]
  %v26 = vld [vmem:[%s0 + $0x14] sm:$0xf]
  %v27 = vld [vmem:[%s0 + $0x18] sm:$0xf]
  %v28 = vld [vmem:[%s0 + $0x1c] sm:$0xf]
  %v29 = vld [vmem:[%s0 + $0x20] sm:$0xf]
  %v30 = vld [vmem:[%s0 + $0x24] sm:$0xf]
  %v31 = vld [vmem:[%s0 + $0x28] sm:$0xf]
  %v32 = vld [vmem:[%s0 + $0x2c] sm:$0xf]
  %v33 = vld [vmem:[%s0 + $0x30] sm:$0xf]
  %v34 = vld [vmem:[%s0 + $0x34] sm:$0xf]
  %v35 = vld [vmem:[%s0 + $0x38] sm:$0xf]
  %v36 = vld [vmem:[%s0 + $0x3c] sm:$0xf]
  %v37 = vld [vmem:[%s0 + $0x40] sm:$0xf]
  %v38 = vld [vmem:[%s0 + $0x44] sm:$0xf]
  %v39 = vld [vmem:[%s0 + $0x48] sm:$0xf]
  %v40 = vld [vmem:[%s0 + $0x4c] sm:$0xf]
  %v41 = vld [vmem:[%s0 + $0x50] sm:$0xf]
  %v42 = vld [vmem:[%s0 + $0x54] sm:$0xf]
  %v43 = vld [vmem:[%s0 + $0x58] sm:$0xf]
  %v44 = vld [vmem:[%s0 + $0x5c] sm:$0xf]
  %v45 = vld [vmem:[%s0 + $0x60] sm:$0xf]
  %v46 = vld [vmem:[%s0 + $0x64] sm:$0xf]
  %v47 = vld [vmem:[%s0 + $0x68] sm:$0xf]
  %v48 = vld [vmem:[%s0 + $0x6c] sm:$0xf]
  %v49 = vld [vmem:[%s0 + $0x70] sm:$0xf]
  %v50 = vld [vmem:[%s0 + $0x74] sm:$0xf]
  %v51 = vld [vmem:[%s0 + $0x78] sm:$0xf]
  %v52 = vld [vmem:[%s0 + $0x7c] sm:$0xf]
  %v53 = vld [vmem:[%s0 + $0x80] sm:$0xf]
  %v54 = vld [vmem:[%s0 + $0x84] sm:$0xf]
  %v55 = vld [vmem:[%s0 + $0x88] sm:$0xf]
  %v56 = vld [vmem:[%s0 + $0x8c] sm:$0xf]
  %v57 = vld [vmem:[%s0 + $0x90] sm:$0xf]
  %v58 = vld [vmem:[%s0 + $0x94] sm:$0xf]
  %v59 = vld [vmem:[%s0 + $0x98] sm:$0xf]
  %v60 = vld [vmem:[%s0 + $0x9c] sm:$0xf]
  %v61 = vld [vmem:[%s0 + $0xa0] sm:$0xf]
  %v62 = vld [vmem:[%s0 + $0xa4] sm:$0xf]
  %v63 = vld [vmem:[%s0 + $0xa8] sm:$0xf]
  %v64 = vld [vmem:[%s0 + $0xac] sm:$0xf]
  %v65 = vld [vmem:[%s0 + $0xb0] sm:$0xf]
  %v66 = vld [vmem:[%s0 + $0xb4] sm:$0xf]
  %v67 = vld [vmem:[%s0 + $0xb8] sm:$0xf]
  %v68 = vld [vmem:[%s0 + $0xbc] sm:$0xf]
  %v69 = vld [vmem:[%s0 + $0xc0] sm:$0xf]
  %v70 = vld [vmem:[%s0 + $0xc4] sm:$0xf]
  %v71 = vld [vmem:[%s0 + $0xc8] sm:$0xf]
  %v72 = vld [vmem:[%s0 + $0xcc] sm:$0xf]
  %v73 = vld [vmem:[%s0 + $0xd0] sm:$0xf]
  %v74 = vld [vmem:[%s0 + $0xd4] sm:$0xf]
  %v75 = vld [vmem:[%s0 + $0xd8] sm:$0xf]
  %v76 = vld [vmem:[%s0 + $0xdc] sm:$0xf]
  %v77 = vld [vmem:[%s0 + $0xe0] sm:$0xf]
  %v78 = vld [vmem:[%s0 + $0xe4] sm:$0xf]
  %v79 = vld [vmem:[%s0 + $0xe8] sm:$0xf]
  %v80 = vld [vmem:[%s0 + $0xec] sm:$0xf]
  %v81 = vld [vmem:[%s0 + $0xf0] sm:$0xf]
  %v82 = vld [vmem:[%s0 + $0xf4] sm:$0xf]
  %v83 = vld [vmem:[%s0 + $0xf8] sm:$0xf]
  %v84 = vld [vmem:[%s0 + $0xfc] sm:$0xf]
  %v85 = vld [vmem:[%s1] sm:$0xf]
  %v86 = vld [vmem:[%s1 + $0x4] sm:$0xf]
  %v87 = vld [vmem:[%s1 + $0x8] sm:$0xf]
  %v88 = vld [vmem:[%s1 + $0xc] sm:$0xf]
  %v89 = vld [vmem:[%s1 + $0x10] sm:$0xf]
  %v90 = vld [vmem:[%s1 + $0x14] sm:$0xf]
  %v91 = vld [vmem:[%s1 + $0x18] sm:$0xf]
  %v92 = vld [vmem:[%s1 + $0x1c] sm:$0xf]
  %v93 = vld [vmem:[%s1 + $0x20] sm:$0xf]
  %v158 = vunpack.c.l.b16 %v21
  %v159 = vunpack.c.l.b16 %v22
  %v160 = vunpack.c.l.b16 %v23
  %v161 = vunpack.c.l.b16 %v24
  %v162 = vunpack.c.l.b16 %v25
  %v163 = vunpack.c.l.b16 %v26
  %v164 = vunpack.c.l.b16 %v27
  %v165 = vunpack.c.l.b16 %v28
  %v166 = vunpack.c.l.b16 %v29
  %v167 = vunpack.c.l.b16 %v30
  %v168 = vunpack.c.l.b16 %v31
  %v169 = vunpack.c.l.b16 %v32
  %v170 = vunpack.c.l.b16 %v33
  %v171 = vunpack.c.l.b16 %v34
  %v172 = vunpack.c.l.b16 %v35
  %v173 = vunpack.c.l.b16 %v36
  %v174 = vunpack.c.l.b16 %v37
  %v175 = vunpack.c.l.b16 %v38
  %v176 = vunpack.c.l.b16 %v39
  %v177 = vunpack.c.l.b16 %v40
  %v178 = vunpack.c.l.b16 %v41
  %v179 = vunpack.c.l.b16 %v42
  %v180 = vunpack.c.l.b16 %v43
  %v181 = vunpack.c.l.b16 %v44
  %v182 = vunpack.c.l.b16 %v45
  %v183 = vunpack.c.l.b16 %v46
  %v184 = vunpack.c.l.b16 %v47
  %v185 = vunpack.c.l.b16 %v48
  %v186 = vunpack.c.l.b16 %v49
  %v187 = vunpack.c.l.b16 %v50
  %v188 = vunpack.c.l.b16 %v51
  %v189 = vunpack.c.l.b16 %v52
  %v190 = vunpack.c.l.b16 %v53
  %v191 = vunpack.c.l.b16 %v54
  %v192 = vunpack.c.l.b16 %v55
  %v193 = vunpack.c.l.b16 %v56
  %v194 = vunpack.c.l.b16 %v57
  %v195 = vunpack.c.l.b16 %v58
  %v196 = vunpack.c.l.b16 %v59
  %v197 = vunpack.c.l.b16 %v60
  %v198 = vunpack.c.l.b16 %v61
  %v199 = vunpack.c.l.b16 %v62
  %v200 = vunpack.c.l.b16 %v63
  %v201 = vunpack.c.l.b16 %v64
  %v202 = vunpack.c.l.b16 %v65
  %v203 = vunpack.c.l.b16 %v66
  %v204 = vunpack.c.l.b16 %v67
  %v205 = vunpack.c.l.b16 %v68
  %v206 = vunpack.c.l.b16 %v69
  %v207 = vunpack.c.l.b16 %v70
  %v208 = vunpack.c.l.b16 %v71
  %v209 = vunpack.c.l.b16 %v72
  %v210 = vunpack.c.l.b16 %v73
  %v211 = vunpack.c.l.b16 %v74
  %v212 = vunpack.c.l.b16 %v75
  %v213 = vunpack.c.l.b16 %v76
  %v214 = vunpack.c.l.b16 %v77
  %v215 = vunpack.c.l.b16 %v78
  %v216 = vunpack.c.l.b16 %v79
  %v217 = vunpack.c.l.b16 %v80
  %v218 = vunpack.c.l.b16 %v81
  %v219 = vunpack.c.l.b16 %v82
  %v220 = vunpack.c.l.b16 %v83
  %v221 = vunpack.c.l.b16 %v84
  %v222 = vpack.c.b16 %v159, %v158
  %v223 = vpack.c.b16 %v161, %v160
  %v224 = vpack.c.b16 %v163, %v162
  %v225 = vpack.c.b16 %v165, %v164
  %v226 = vpack.c.b16 %v167, %v166
  %v227 = vpack.c.b16 %v169, %v168
  %v228 = vpack.c.b16 %v171, %v170
  %v229 = vpack.c.b16 %v173, %v172
  %v230 = vpack.c.b16 %v175, %v174
  %v231 = vpack.c.b16 %v177, %v176
  %v232 = vpack.c.b16 %v179, %v178
  %v233 = vpack.c.b16 %v181, %v180
  %v234 = vpack.c.b16 %v183, %v182
  %v235 = vpack.c.b16 %v185, %v184
  %v236 = vpack.c.b16 %v187, %v186
  %v237 = vpack.c.b16 %v189, %v188
  %v238 = vpack.c.b16 %v191, %v190
  %v239 = vpack.c.b16 %v193, %v192
  %v240 = vpack.c.b16 %v195, %v194
  %v241 = vpack.c.b16 %v197, %v196
  %v242 = vpack.c.b16 %v199, %v198
  %v243 = vpack.c.b16 %v201, %v200
  %v244 = vpack.c.b16 %v203, %v202
  %v245 = vpack.c.b16 %v205, %v204
  %v246 = vpack.c.b16 %v207, %v206
  %v247 = vpack.c.b16 %v209, %v208
  %v248 = vpack.c.b16 %v211, %v210
  %v249 = vpack.c.b16 %v213, %v212
  %v250 = vpack.c.b16 %v215, %v214
  %v251 = vpack.c.b16 %v217, %v216
  %v252 = vpack.c.b16 %v219, %v218
  %v253 = vpack.c.b16 %v221, %v220
  %v263 = vunpack.c.l.b16 %v85
  %v264 = vunpack.c.l.b16 %v86
  %v265 = vunpack.c.l.b16 %v87
  %v266 = vunpack.c.l.b16 %v88
  %v267 = vunpack.c.l.b16 %v89
  %v268 = vunpack.c.l.b16 %v90
  %v269 = vunpack.c.l.b16 %v91
  %v270 = vunpack.c.l.b16 %v92
  %v271 = vunpack.c.l.b16 %v93
  %v272 = vpack.c.b16 %v264, %v263
  %v273 = vpack.c.b16 %v266, %v265
  %v274 = vpack.c.b16 %v268, %v267
  %v275 = vpack.c.b16 %v270, %v269
  %v276 = vpack.c.b16 %v271, %v271
  %vm281 = vcmask 588800
  %v283 = vsel %vm281, %v222, 0
  %v286 = vsel %vm281, %v223, 0
  %v289 = vsel %vm281, %v224, 0
  %v292 = vsel %vm281, %v225, 0
  %v295 = vsel %vm281, %v226, 0
  %v298 = vsel %vm281, %v227, 0
  %v301 = vsel %vm281, %v228, 0
  %v304 = vsel %vm281, %v229, 0
  %v307 = vsel %vm281, %v230, 0
  %v310 = vsel %vm281, %v231, 0
  %v313 = vsel %vm281, %v232, 0
  %v316 = vsel %vm281, %v233, 0
  %v319 = vsel %vm281, %v234, 0
  %v322 = vsel %vm281, %v235, 0
  %v325 = vsel %vm281, %v236, 0
  %v328 = vsel %vm281, %v237, 0
  %v331 = vsel %vm281, %v238, 0
  %v334 = vsel %vm281, %v239, 0
  %v337 = vsel %vm281, %v240, 0
  %v340 = vsel %vm281, %v241, 0
  %v343 = vsel %vm281, %v242, 0
  %v346 = vsel %vm281, %v243, 0
  %v349 = vsel %vm281, %v244, 0
  %v352 = vsel %vm281, %v245, 0
  %v355 = vsel %vm281, %v246, 0
  %v358 = vsel %vm281, %v247, 0
  %v361 = vsel %vm281, %v248, 0
  %v364 = vsel %vm281, %v249, 0
  %v367 = vsel %vm281, %v250, 0
  %v370 = vsel %vm281, %v251, 0
  %v373 = vsel %vm281, %v252, 0
  %v376 = vsel %vm281, %v253, 0
  %vm378 = vcmask 1043456
  %v380 = vsel %vm378, %v276, 0
  %382 = vmatpush.bf16.msra.mxu0 0
  %383 = vmatpush.bf16.msra.mxu0 0
  %384 = vmatpush.bf16.msra.mxu0 0
  %385 = vmatpush.bf16.msra.mxu0 %v380
  %386 = vmatpush.bf16.msra.mxu0 %v275
  %387 = vmatpush.bf16.msra.mxu0 %v274
  %388 = vmatpush.bf16.msra.mxu0 %v273
  %389 = vmatpush.bf16.msra.mxu0 %v272
  %390 = vmatmul.bf16.gmra.mxu0 %v283
  %v391 = vpop.f32.mrf.mxu0
  %v392 = vadd.f32 0.0, %v391
  %v393 = vpop.f32.mrf.mxu0
  %v394 = vadd.f32 0.0, %v393
  %395 = vmatmul.bf16.gmra.mxu0 %v286
  %v396 = vpop.f32.mrf.mxu0
  %v397 = vadd.f32 0.0, %v396
  %v398 = vpop.f32.mrf.mxu0
  %v399 = vadd.f32 0.0, %v398
  %400 = vmatmul.bf16.gmra.mxu0 %v289
  %v401 = vpop.f32.mrf.mxu0
  %v402 = vadd.f32 0.0, %v401
  %v403 = vpop.f32.mrf.mxu0
  %v404 = vadd.f32 0.0, %v403
  %405 = vmatmul.bf16.gmra.mxu0 %v292
  %v406 = vpop.f32.mrf.mxu0
  %v407 = vadd.f32 0.0, %v406
  %v408 = vpop.f32.mrf.mxu0
  %v409 = vadd.f32 0.0, %v408
  %410 = vmatmul.bf16.gmra.mxu0 %v295
  %v411 = vpop.f32.mrf.mxu0
  %v412 = vadd.f32 0.0, %v411
  %v413 = vpop.f32.mrf.mxu0
  %v414 = vadd.f32 0.0, %v413
  %415 = vmatmul.bf16.gmra.mxu0 %v298
  %v416 = vpop.f32.mrf.mxu0
  %v417 = vadd.f32 0.0, %v416
  %v418 = vpop.f32.mrf.mxu0
  %v419 = vadd.f32 0.0, %v418
  %420 = vmatmul.bf16.gmra.mxu0 %v301
  %v421 = vpop.f32.mrf.mxu0
  %v422 = vadd.f32 0.0, %v421
  %v423 = vpop.f32.mrf.mxu0
  %v424 = vadd.f32 0.0, %v423
  %425 = vmatmul.bf16.gmra.mxu0 %v304
  %v426 = vpop.f32.mrf.mxu0
  %v427 = vadd.f32 0.0, %v426
  %v428 = vpop.f32.mrf.mxu0
  %v429 = vadd.f32 0.0, %v428
  %430 = vmatmul.bf16.gmra.mxu0 %v307
  %v431 = vpop.f32.mrf.mxu0
  %v432 = vadd.f32 0.0, %v431
  %v433 = vpop.f32.mrf.mxu0
  %v434 = vadd.f32 0.0, %v433
  %435 = vmatmul.bf16.gmra.mxu0 %v310
  %v436 = vpop.f32.mrf.mxu0
  %v437 = vadd.f32 0.0, %v436
  %v438 = vpop.f32.mrf.mxu0
  %v439 = vadd.f32 0.0, %v438
  %440 = vmatmul.bf16.gmra.mxu0 %v313
  %v441 = vpop.f32.mrf.mxu0
  %v442 = vadd.f32 0.0, %v441
  %v443 = vpop.f32.mrf.mxu0
  %v444 = vadd.f32 0.0, %v443
  %445 = vmatmul.bf16.gmra.mxu0 %v316
  %v446 = vpop.f32.mrf.mxu0
  %v447 = vadd.f32 0.0, %v446
  %v448 = vpop.f32.mrf.mxu0
  %v449 = vadd.f32 0.0, %v448
  %450 = vmatmul.bf16.gmra.mxu0 %v319
  %v451 = vpop.f32.mrf.mxu0
  %v452 = vadd.f32 0.0, %v451
  %v453 = vpop.f32.mrf.mxu0
  %v454 = vadd.f32 0.0, %v453
  %455 = vmatmul.bf16.gmra.mxu0 %v322
  %v456 = vpop.f32.mrf.mxu0
  %v457 = vadd.f32 0.0, %v456
  %v458 = vpop.f32.mrf.mxu0
  %v459 = vadd.f32 0.0, %v458
  %460 = vmatmul.bf16.gmra.mxu0 %v325
  %v461 = vpop.f32.mrf.mxu0
  %v462 = vadd.f32 0.0, %v461
  %v463 = vpop.f32.mrf.mxu0
  %v464 = vadd.f32 0.0, %v463
  %465 = vmatmul.bf16.gmra.mxu0 %v328
  %v466 = vpop.f32.mrf.mxu0
  %v467 = vadd.f32 0.0, %v466
  %v468 = vpop.f32.mrf.mxu0
  %v469 = vadd.f32 0.0, %v468
  %470 = vmatmul.bf16.gmra.mxu0 %v331
  %v471 = vpop.f32.mrf.mxu0
  %v472 = vadd.f32 0.0, %v471
  %v473 = vpop.f32.mrf.mxu0
  %v474 = vadd.f32 0.0, %v473
  %475 = vmatmul.bf16.gmra.mxu0 %v334
  %v476 = vpop.f32.mrf.mxu0
  %v477 = vadd.f32 0.0, %v476
  %v478 = vpop.f32.mrf.mxu0
  %v479 = vadd.f32 0.0, %v478
  %480 = vmatmul.bf16.gmra.mxu0 %v337
  %v481 = vpop.f32.mrf.mxu0
  %v482 = vadd.f32 0.0, %v481
  %v483 = vpop.f32.mrf.mxu0
  %v484 = vadd.f32 0.0, %v483
  %485 = vmatmul.bf16.gmra.mxu0 %v340
  %v486 = vpop.f32.mrf.mxu0
  %v487 = vadd.f32 0.0, %v486
  %v488 = vpop.f32.mrf.mxu0
  %v489 = vadd.f32 0.0, %v488
  %490 = vmatmul.bf16.gmra.mxu0 %v343
  %v491 = vpop.f32.mrf.mxu0
  %v492 = vadd.f32 0.0, %v491
  %v493 = vpop.f32.mrf.mxu0
  %v494 = vadd.f32 0.0, %v493
  %495 = vmatmul.bf16.gmra.mxu0 %v346
  %v496 = vpop.f32.mrf.mxu0
  %v497 = vadd.f32 0.0, %v496
  %v498 = vpop.f32.mrf.mxu0
  %v499 = vadd.f32 0.0, %v498
  %500 = vmatmul.bf16.gmra.mxu0 %v349
  %v501 = vpop.f32.mrf.mxu0
  %v502 = vadd.f32 0.0, %v501
  %v503 = vpop.f32.mrf.mxu0
  %v504 = vadd.f32 0.0, %v503
  %505 = vmatmul.bf16.gmra.mxu0 %v352
  %v506 = vpop.f32.mrf.mxu0
  %v507 = vadd.f32 0.0, %v506
  %v508 = vpop.f32.mrf.mxu0
  %v509 = vadd.f32 0.0, %v508
  %510 = vmatmul.bf16.gmra.mxu0 %v355
  %v511 = vpop.f32.mrf.mxu0
  %v512 = vadd.f32 0.0, %v511
  %v513 = vpop.f32.mrf.mxu0
  %v514 = vadd.f32 0.0, %v513
  %515 = vmatmul.bf16.gmra.mxu0 %v358
  %v516 = vpop.f32.mrf.mxu0
  %v517 = vadd.f32 0.0, %v516
  %v518 = vpop.f32.mrf.mxu0
  %v519 = vadd.f32 0.0, %v518
  %520 = vmatmul.bf16.gmra.mxu0 %v361
  %v521 = vpop.f32.mrf.mxu0
  %v522 = vadd.f32 0.0, %v521
  %v523 = vpop.f32.mrf.mxu0
  %v524 = vadd.f32 0.0, %v523
  %525 = vmatmul.bf16.gmra.mxu0 %v364
  %v526 = vpop.f32.mrf.mxu0
  %v527 = vadd.f32 0.0, %v526
  %v528 = vpop.f32.mrf.mxu0
  %v529 = vadd.f32 0.0, %v528
  %530 = vmatmul.bf16.gmra.mxu0 %v367
  %v531 = vpop.f32.mrf.mxu0
  %v532 = vadd.f32 0.0, %v531
  %v533 = vpop.f32.mrf.mxu0
  %v534 = vadd.f32 0.0, %v533
  %535 = vmatmul.bf16.gmra.mxu0 %v370
  %v536 = vpop.f32.mrf.mxu0
  %v537 = vadd.f32 0.0, %v536
  %v538 = vpop.f32.mrf.mxu0
  %v539 = vadd.f32 0.0, %v538
  %540 = vmatmul.bf16.gmra.mxu0 %v373
  %v541 = vpop.f32.mrf.mxu0
  %v542 = vadd.f32 0.0, %v541
  %v543 = vpop.f32.mrf.mxu0
  %v544 = vadd.f32 0.0, %v543
  %545 = vmatmul.bf16.gmra.mxu0 %v376
  %v546 = vpop.f32.mrf.mxu0
  %v547 = vadd.f32 0.0, %v546
  %v548 = vpop.f32.mrf.mxu0
  %v549 = vadd.f32 0.0, %v548
  %550 = vdwg.mxu0
  %v551 = vld [vmem:[%s2] sm:$0x1]
  %v553 = vperm.slane %v551, 0
  %v555 = vmul.f32 %v392, %v553
  %v556 = vmul.f32 %v394, %v553
  %v557 = vmul.f32 %v397, %v553
  %v558 = vmul.f32 %v399, %v553
  %v559 = vmul.f32 %v402, %v553
  %v560 = vmul.f32 %v404, %v553
  %v561 = vmul.f32 %v407, %v553
  %v562 = vmul.f32 %v409, %v553
  %v563 = vmul.f32 %v412, %v553
  %v564 = vmul.f32 %v414, %v553
  %v565 = vmul.f32 %v417, %v553
  %v566 = vmul.f32 %v419, %v553
  %v567 = vmul.f32 %v422, %v553
  %v568 = vmul.f32 %v424, %v553
  %v569 = vmul.f32 %v427, %v553
  %v570 = vmul.f32 %v429, %v553
  %v571 = vmul.f32 %v432, %v553
  %v572 = vmul.f32 %v434, %v553
  %v573 = vmul.f32 %v437, %v553
  %v574 = vmul.f32 %v439, %v553
  %v575 = vmul.f32 %v442, %v553
  %v576 = vmul.f32 %v444, %v553
  %v577 = vmul.f32 %v447, %v553
  %v578 = vmul.f32 %v449, %v553
  %v579 = vmul.f32 %v452, %v553
  %v580 = vmul.f32 %v454, %v553
  %v581 = vmul.f32 %v457, %v553
  %v582 = vmul.f32 %v459, %v553
  %v583 = vmul.f32 %v462, %v553
  %v584 = vmul.f32 %v464, %v553
  %v585 = vmul.f32 %v467, %v553
  %v586 = vmul.f32 %v469, %v553
  %v587 = vmul.f32 %v472, %v553
  %v588 = vmul.f32 %v474, %v553
  %v589 = vmul.f32 %v477, %v553
  %v590 = vmul.f32 %v479, %v553
  %v591 = vmul.f32 %v482, %v553
  %v592 = vmul.f32 %v484, %v553
  %v593 = vmul.f32 %v487, %v553
  %v594 = vmul.f32 %v489, %v553
  %v595 = vmul.f32 %v492, %v553
  %v596 = vmul.f32 %v494, %v553
  %v597 = vmul.f32 %v497, %v553
  %v598 = vmul.f32 %v499, %v553
  %v599 = vmul.f32 %v502, %v553
  %v600 = vmul.f32 %v504, %v553
  %v601 = vmul.f32 %v507, %v553
  %v602 = vmul.f32 %v509, %v553
  %v603 = vmul.f32 %v512, %v553
  %v604 = vmul.f32 %v514, %v553
  %v605 = vmul.f32 %v517, %v553
  %v606 = vmul.f32 %v519, %v553
  %v607 = vmul.f32 %v522, %v553
  %v608 = vmul.f32 %v524, %v553
  %v609 = vmul.f32 %v527, %v553
  %v610 = vmul.f32 %v529, %v553
  %v611 = vmul.f32 %v532, %v553
  %v612 = vmul.f32 %v534, %v553
  %v613 = vmul.f32 %v537, %v553
  %v614 = vmul.f32 %v539, %v553
  %v615 = vmul.f32 %v542, %v553
  %v616 = vmul.f32 %v544, %v553
  %v617 = vmul.f32 %v547, %v553
  %v618 = vmul.f32 %v549, %v553
  %v619 = vld [vmem:[%s3] sm:$0x1]
  %v621 = vperm.slane %v619, 0
  %v623 = vadd.f32 %v555, %v621
  %v624 = vadd.f32 %v556, %v621
  %v625 = vadd.f32 %v557, %v621
  %v626 = vadd.f32 %v558, %v621
  %v627 = vadd.f32 %v559, %v621
  %v628 = vadd.f32 %v560, %v621
  %v629 = vadd.f32 %v561, %v621
  %v630 = vadd.f32 %v562, %v621
  %v631 = vadd.f32 %v563, %v621
  %v632 = vadd.f32 %v564, %v621
  %v633 = vadd.f32 %v565, %v621
  %v634 = vadd.f32 %v566, %v621
  %v635 = vadd.f32 %v567, %v621
  %v636 = vadd.f32 %v568, %v621
  %v637 = vadd.f32 %v569, %v621
  %v638 = vadd.f32 %v570, %v621
  %v639 = vadd.f32 %v571, %v621
  %v640 = vadd.f32 %v572, %v621
  %v641 = vadd.f32 %v573, %v621
  %v642 = vadd.f32 %v574, %v621
  %v643 = vadd.f32 %v575, %v621
  %v644 = vadd.f32 %v576, %v621
  %v645 = vadd.f32 %v577, %v621
  %v646 = vadd.f32 %v578, %v621
  %v647 = vadd.f32 %v579, %v621
  %v648 = vadd.f32 %v580, %v621
  %v649 = vadd.f32 %v581, %v621
  %v650 = vadd.f32 %v582, %v621
  %v651 = vadd.f32 %v583, %v621
  %v652 = vadd.f32 %v584, %v621
  %v653 = vadd.f32 %v585, %v621
  %v654 = vadd.f32 %v586, %v621
  %v655 = vadd.f32 %v587, %v621
  %v656 = vadd.f32 %v588, %v621
  %v657 = vadd.f32 %v589, %v621
  %v658 = vadd.f32 %v590, %v621
  %v659 = vadd.f32 %v591, %v621
  %v660 = vadd.f32 %v592, %v621
  %v661 = vadd.f32 %v593, %v621
  %v662 = vadd.f32 %v594, %v621
  %v663 = vadd.f32 %v595, %v621
  %v664 = vadd.f32 %v596, %v621
  %v665 = vadd.f32 %v597, %v621
  %v666 = vadd.f32 %v598, %v621
  %v667 = vadd.f32 %v599, %v621
  %v668 = vadd.f32 %v600, %v621
  %v669 = vadd.f32 %v601, %v621
  %v670 = vadd.f32 %v602, %v621
  %v671 = vadd.f32 %v603, %v621
  %v672 = vadd.f32 %v604, %v621
  %v673 = vadd.f32 %v605, %v621
  %v674 = vadd.f32 %v606, %v621
  %v675 = vadd.f32 %v607, %v621
  %v676 = vadd.f32 %v608, %v621
  %v677 = vadd.f32 %v609, %v621
  %v678 = vadd.f32 %v610, %v621
  %v679 = vadd.f32 %v611, %v621
  %v680 = vadd.f32 %v612, %v621
  %v681 = vadd.f32 %v613, %v621
  %v682 = vadd.f32 %v614, %v621
  %v683 = vadd.f32 %v615, %v621
  %v684 = vadd.f32 %v616, %v621
  %v685 = vadd.f32 %v617, %v621
  %v686 = vadd.f32 %v618, %v621
  %v687 = vld [vmem:[%s4] sm:$0xf]
  %v688 = vld [vmem:[%s4 + $0x4] sm:$0xf]
  %v689 = vld [vmem:[%s4 + $0x8] sm:$0xf]
  %v690 = vld [vmem:[%s4 + $0xc] sm:$0xf]
  %v691 = vld [vmem:[%s4 + $0x10] sm:$0xf]
  %v692 = vld [vmem:[%s4 + $0x14] sm:$0xf]
  %v693 = vld [vmem:[%s4 + $0x18] sm:$0xf]
  %v694 = vld [vmem:[%s4 + $0x1c] sm:$0xf]
  %v695 = vld [vmem:[%s4 + $0x20] sm:$0xf]
  %v696 = vld [vmem:[%s4 + $0x24] sm:$0xf]
  %v697 = vld [vmem:[%s4 + $0x28] sm:$0xf]
  %v698 = vld [vmem:[%s4 + $0x2c] sm:$0xf]
  %v699 = vld [vmem:[%s4 + $0x30] sm:$0xf]
  %v700 = vld [vmem:[%s4 + $0x34] sm:$0xf]
  %v701 = vld [vmem:[%s4 + $0x38] sm:$0xf]
  %v702 = vld [vmem:[%s4 + $0x3c] sm:$0xf]
  %v703 = vld [vmem:[%s4 + $0x40] sm:$0xf]
  %v704 = vld [vmem:[%s4 + $0x44] sm:$0xf]
  %v705 = vld [vmem:[%s4 + $0x48] sm:$0xf]
  %v706 = vld [vmem:[%s4 + $0x4c] sm:$0xf]
  %v707 = vld [vmem:[%s4 + $0x50] sm:$0xf]
  %v708 = vld [vmem:[%s4 + $0x54] sm:$0xf]
  %v709 = vld [vmem:[%s4 + $0x58] sm:$0xf]
  %v710 = vld [vmem:[%s4 + $0x5c] sm:$0xf]
  %v711 = vld [vmem:[%s4 + $0x60] sm:$0xf]
  %v712 = vld [vmem:[%s4 + $0x64] sm:$0xf]
  %v713 = vld [vmem:[%s4 + $0x68] sm:$0xf]
  %v714 = vld [vmem:[%s4 + $0x6c] sm:$0xf]
  %v715 = vld [vmem:[%s4 + $0x70] sm:$0xf]
  %v716 = vld [vmem:[%s4 + $0x74] sm:$0xf]
  %v717 = vld [vmem:[%s4 + $0x78] sm:$0xf]
  %v718 = vld [vmem:[%s4 + $0x7c] sm:$0xf]
  %v719 = vld [vmem:[%s4 + $0x80] sm:$0xf]
  %v720 = vld [vmem:[%s4 + $0x84] sm:$0xf]
  %v721 = vld [vmem:[%s4 + $0x88] sm:$0xf]
  %v722 = vld [vmem:[%s4 + $0x8c] sm:$0xf]
  %v723 = vld [vmem:[%s4 + $0x90] sm:$0xf]
  %v724 = vld [vmem:[%s4 + $0x94] sm:$0xf]
  %v725 = vld [vmem:[%s4 + $0x98] sm:$0xf]
  %v726 = vld [vmem:[%s4 + $0x9c] sm:$0xf]
  %v727 = vld [vmem:[%s4 + $0xa0] sm:$0xf]
  %v728 = vld [vmem:[%s4 + $0xa4] sm:$0xf]
  %v729 = vld [vmem:[%s4 + $0xa8] sm:$0xf]
  %v730 = vld [vmem:[%s4 + $0xac] sm:$0xf]
  %v731 = vld [vmem:[%s4 + $0xb0] sm:$0xf]
  %v732 = vld [vmem:[%s4 + $0xb4] sm:$0xf]
  %v733 = vld [vmem:[%s4 + $0xb8] sm:$0xf]
  %v734 = vld [vmem:[%s4 + $0xbc] sm:$0xf]
  %v735 = vld [vmem:[%s4 + $0xc0] sm:$0xf]
  %v736 = vld [vmem:[%s4 + $0xc4] sm:$0xf]
  %v737 = vld [vmem:[%s4 + $0xc8] sm:$0xf]
  %v738 = vld [vmem:[%s4 + $0xcc] sm:$0xf]
  %v739 = vld [vmem:[%s4 + $0xd0] sm:$0xf]
  %v740 = vld [vmem:[%s4 + $0xd4] sm:$0xf]
  %v741 = vld [vmem:[%s4 + $0xd8] sm:$0xf]
  %v742 = vld [vmem:[%s4 + $0xdc] sm:$0xf]
  %v743 = vld [vmem:[%s4 + $0xe0] sm:$0xf]
  %v744 = vld [vmem:[%s4 + $0xe4] sm:$0xf]
  %v745 = vld [vmem:[%s4 + $0xe8] sm:$0xf]
  %v746 = vld [vmem:[%s4 + $0xec] sm:$0xf]
  %v747 = vld [vmem:[%s4 + $0xf0] sm:$0xf]
  %v748 = vld [vmem:[%s4 + $0xf4] sm:$0xf]
  %v749 = vld [vmem:[%s4 + $0xf8] sm:$0xf]
  %v750 = vld [vmem:[%s4 + $0xfc] sm:$0xf]
  %v751 = vunpack.c.l.bf16 %v687
  %v752 = vunpack.c.l.bf16 %v688
  %v753 = vunpack.c.l.bf16 %v689
  %v754 = vunpack.c.l.bf16 %v690
  %v755 = vunpack.c.l.bf16 %v691
  %v756 = vunpack.c.l.bf16 %v692
  %v757 = vunpack.c.l.bf16 %v693
  %v758 = vunpack.c.l.bf16 %v694
  %v759 = vunpack.c.l.bf16 %v695
  %v760 = vunpack.c.l.bf16 %v696
  %v761 = vunpack.c.l.bf16 %v697
  %v762 = vunpack.c.l.bf16 %v698
  %v763 = vunpack.c.l.bf16 %v699
  %v764 = vunpack.c.l.bf16 %v700
  %v765 = vunpack.c.l.bf16 %v701
  %v766 = vunpack.c.l.bf16 %v702
  %v767 = vunpack.c.l.bf16 %v703
  %v768 = vunpack.c.l.bf16 %v704
  %v769 = vunpack.c.l.bf16 %v705
  %v770 = vunpack.c.l.bf16 %v706
  %v771 = vunpack.c.l.bf16 %v707
  %v772 = vunpack.c.l.bf16 %v708
  %v773 = vunpack.c.l.bf16 %v709
  %v774 = vunpack.c.l.bf16 %v710
  %v775 = vunpack.c.l.bf16 %v711
  %v776 = vunpack.c.l.bf16 %v712
  %v777 = vunpack.c.l.bf16 %v713
  %v778 = vunpack.c.l.bf16 %v714
  %v779 = vunpack.c.l.bf16 %v715
  %v780 = vunpack.c.l.bf16 %v716
  %v781 = vunpack.c.l.bf16 %v717
  %v782 = vunpack.c.l.bf16 %v718
  %v783 = vunpack.c.l.bf16 %v719
  %v784 = vunpack.c.l.bf16 %v720
  %v785 = vunpack.c.l.bf16 %v721
  %v786 = vunpack.c.l.bf16 %v722
  %v787 = vunpack.c.l.bf16 %v723
  %v788 = vunpack.c.l.bf16 %v724
  %v789 = vunpack.c.l.bf16 %v725
  %v790 = vunpack.c.l.bf16 %v726
  %v791 = vunpack.c.l.bf16 %v727
  %v792 = vunpack.c.l.bf16 %v728
  %v793 = vunpack.c.l.bf16 %v729
  %v794 = vunpack.c.l.bf16 %v730
  %v795 = vunpack.c.l.bf16 %v731
  %v796 = vunpack.c.l.bf16 %v732
  %v797 = vunpack.c.l.bf16 %v733
  %v798 = vunpack.c.l.bf16 %v734
  %v799 = vunpack.c.l.bf16 %v735
  %v800 = vunpack.c.l.bf16 %v736
  %v801 = vunpack.c.l.bf16 %v737
  %v802 = vunpack.c.l.bf16 %v738
  %v803 = vunpack.c.l.bf16 %v739
  %v804 = vunpack.c.l.bf16 %v740
  %v805 = vunpack.c.l.bf16 %v741
  %v806 = vunpack.c.l.bf16 %v742
  %v807 = vunpack.c.l.bf16 %v743
  %v808 = vunpack.c.l.bf16 %v744
  %v809 = vunpack.c.l.bf16 %v745
  %v810 = vunpack.c.l.bf16 %v746
  %v811 = vunpack.c.l.bf16 %v747
  %v812 = vunpack.c.l.bf16 %v748
  %v813 = vunpack.c.l.bf16 %v749
  %v814 = vunpack.c.l.bf16 %v750
  %v815 = vadd.f32 %v623, %v751
  %v816 = vadd.f32 %v624, %v752
  %v817 = vadd.f32 %v625, %v753
  %v818 = vadd.f32 %v626, %v754
  %v819 = vadd.f32 %v627, %v755
  %v820 = vadd.f32 %v628, %v756
  %v821 = vadd.f32 %v629, %v757
  %v822 = vadd.f32 %v630, %v758
  %v823 = vadd.f32 %v631, %v759
  %v824 = vadd.f32 %v632, %v760
  %v825 = vadd.f32 %v633, %v761
  %v826 = vadd.f32 %v634, %v762
  %v827 = vadd.f32 %v635, %v763
  %v828 = vadd.f32 %v636, %v764
  %v829 = vadd.f32 %v637, %v765
  %v830 = vadd.f32 %v638, %v766
  %v831 = vadd.f32 %v639, %v767
  %v832 = vadd.f32 %v640, %v768
  %v833 = vadd.f32 %v641, %v769
  %v834 = vadd.f32 %v642, %v770
  %v835 = vadd.f32 %v643, %v771
  %v836 = vadd.f32 %v644, %v772
  %v837 = vadd.f32 %v645, %v773
  %v838 = vadd.f32 %v646, %v774
  %v839 = vadd.f32 %v647, %v775
  %v840 = vadd.f32 %v648, %v776
  %v841 = vadd.f32 %v649, %v777
  %v842 = vadd.f32 %v650, %v778
  %v843 = vadd.f32 %v651, %v779
  %v844 = vadd.f32 %v652, %v780
  %v845 = vadd.f32 %v653, %v781
  %v846 = vadd.f32 %v654, %v782
  %v847 = vadd.f32 %v655, %v783
  %v848 = vadd.f32 %v656, %v784
  %v849 = vadd.f32 %v657, %v785
  %v850 = vadd.f32 %v658, %v786
  %v851 = vadd.f32 %v659, %v787
  %v852 = vadd.f32 %v660, %v788
  %v853 = vadd.f32 %v661, %v789
  %v854 = vadd.f32 %v662, %v790
  %v855 = vadd.f32 %v663, %v791
  %v856 = vadd.f32 %v664, %v792
  %v857 = vadd.f32 %v665, %v793
  %v858 = vadd.f32 %v666, %v794
  %v859 = vadd.f32 %v667, %v795
  %v860 = vadd.f32 %v668, %v796
  %v861 = vadd.f32 %v669, %v797
  %v862 = vadd.f32 %v670, %v798
  %v863 = vadd.f32 %v671, %v799
  %v864 = vadd.f32 %v672, %v800
  %v865 = vadd.f32 %v673, %v801
  %v866 = vadd.f32 %v674, %v802
  %v867 = vadd.f32 %v675, %v803
  %v868 = vadd.f32 %v676, %v804
  %v869 = vadd.f32 %v677, %v805
  %v870 = vadd.f32 %v678, %v806
  %v871 = vadd.f32 %v679, %v807
  %v872 = vadd.f32 %v680, %v808
  %v873 = vadd.f32 %v681, %v809
  %v874 = vadd.f32 %v682, %v810
  %v875 = vadd.f32 %v683, %v811
  %v876 = vadd.f32 %v684, %v812
  %v877 = vadd.f32 %v685, %v813
  %v878 = vadd.f32 %v686, %v814
  %v879 = vmax.f32 %v815, 0.0
  %v880 = vmax.f32 %v816, 0.0
  %v881 = vmax.f32 %v817, 0.0
  %v882 = vmax.f32 %v818, 0.0
  %v883 = vmax.f32 %v819, 0.0
  %v884 = vmax.f32 %v820, 0.0
  %v885 = vmax.f32 %v821, 0.0
  %v886 = vmax.f32 %v822, 0.0
  %v887 = vmax.f32 %v823, 0.0
  %v888 = vmax.f32 %v824, 0.0
  %v889 = vmax.f32 %v825, 0.0
  %v890 = vmax.f32 %v826, 0.0
  %v891 = vmax.f32 %v827, 0.0
  %v892 = vmax.f32 %v828, 0.0
  %v893 = vmax.f32 %v829, 0.0
  %v894 = vmax.f32 %v830, 0.0
  %v895 = vmax.f32 %v831, 0.0
  %v896 = vmax.f32 %v832, 0.0
  %v897 = vmax.f32 %v833, 0.0
  %v898 = vmax.f32 %v834, 0.0
  %v899 = vmax.f32 %v835, 0.0
  %v900 = vmax.f32 %v836, 0.0
  %v901 = vmax.f32 %v837, 0.0
  %v902 = vmax.f32 %v838, 0.0
  %v903 = vmax.f32 %v839, 0.0
  %v904 = vmax.f32 %v840, 0.0
  %v905 = vmax.f32 %v841, 0.0
  %v906 = vmax.f32 %v842, 0.0
  %v907 = vmax.f32 %v843, 0.0
  %v908 = vmax.f32 %v844, 0.0
  %v909 = vmax.f32 %v845, 0.0
  %v910 = vmax.f32 %v846, 0.0
  %v911 = vmax.f32 %v847, 0.0
  %v912 = vmax.f32 %v848, 0.0
  %v913 = vmax.f32 %v849, 0.0
  %v914 = vmax.f32 %v850, 0.0
  %v915 = vmax.f32 %v851, 0.0
  %v916 = vmax.f32 %v852, 0.0
  %v917 = vmax.f32 %v853, 0.0
  %v918 = vmax.f32 %v854, 0.0
  %v919 = vmax.f32 %v855, 0.0
  %v920 = vmax.f32 %v856, 0.0
  %v921 = vmax.f32 %v857, 0.0
  %v922 = vmax.f32 %v858, 0.0
  %v923 = vmax.f32 %v859, 0.0
  %v924 = vmax.f32 %v860, 0.0
  %v925 = vmax.f32 %v861, 0.0
  %v926 = vmax.f32 %v862, 0.0
  %v927 = vmax.f32 %v863, 0.0
  %v928 = vmax.f32 %v864, 0.0
  %v929 = vmax.f32 %v865, 0.0
  %v930 = vmax.f32 %v866, 0.0
  %v931 = vmax.f32 %v867, 0.0
  %v932 = vmax.f32 %v868, 0.0
  %v933 = vmax.f32 %v869, 0.0
  %v934 = vmax.f32 %v870, 0.0
  %v935 = vmax.f32 %v871, 0.0
  %v936 = vmax.f32 %v872, 0.0
  %v937 = vmax.f32 %v873, 0.0
  %v938 = vmax.f32 %v874, 0.0
  %v939 = vmax.f32 %v875, 0.0
  %v940 = vmax.f32 %v876, 0.0
  %v941 = vmax.f32 %v877, 0.0
  %v942 = vmax.f32 %v878, 0.0
  %943 = vst [vmem:[%s5] sm:$0xff] %v879
  %944 = vst [vmem:[%s5 + $0x8] sm:$0xff] %v880
  %945 = vst [vmem:[%s5 + $0x10] sm:$0xff] %v881
  %946 = vst [vmem:[%s5 + $0x18] sm:$0xff] %v882
  %947 = vst [vmem:[%s5 + $0x20] sm:$0xff] %v883
  %948 = vst [vmem:[%s5 + $0x28] sm:$0xff] %v884
  %949 = vst [vmem:[%s5 + $0x30] sm:$0xff] %v885
  %950 = vst [vmem:[%s5 + $0x38] sm:$0xff] %v886
  %951 = vst [vmem:[%s5 + $0x40] sm:$0xff] %v887
  %952 = vst [vmem:[%s5 + $0x48] sm:$0xff] %v888
  %953 = vst [vmem:[%s5 + $0x50] sm:$0xff] %v889
  %954 = vst [vmem:[%s5 + $0x58] sm:$0xff] %v890
  %955 = vst [vmem:[%s5 + $0x60] sm:$0xff] %v891
  %956 = vst [vmem:[%s5 + $0x68] sm:$0xff] %v892
  %957 = vst [vmem:[%s5 + $0x70] sm:$0xff] %v893
  %958 = vst [vmem:[%s5 + $0x78] sm:$0xff] %v894
  %959 = vst [vmem:[%s5 + $0x80] sm:$0xff] %v895
  %960 = vst [vmem:[%s5 + $0x88] sm:$0xff] %v896
  %961 = vst [vmem:[%s5 + $0x90] sm:$0xff] %v897
  %962 = vst [vmem:[%s5 + $0x98] sm:$0xff] %v898
  %963 = vst [vmem:[%s5 + $0xa0] sm:$0xff] %v899
  %964 = vst [vmem:[%s5 + $0xa8] sm:$0xff] %v900
  %965 = vst [vmem:[%s5 + $0xb0] sm:$0xff] %v901
  %966 = vst [vmem:[%s5 + $0xb8] sm:$0xff] %v902
  %967 = vst [vmem:[%s5 + $0xc0] sm:$0xff] %v903
  %968 = vst [vmem:[%s5 + $0xc8] sm:$0xff] %v904
  %969 = vst [vmem:[%s5 + $0xd0] sm:$0xff] %v905
  %970 = vst [vmem:[%s5 + $0xd8] sm:$0xff] %v906
  %971 = vst [vmem:[%s5 + $0xe0] sm:$0xff] %v907
  %972 = vst [vmem:[%s5 + $0xe8] sm:$0xff] %v908
  %973 = vst [vmem:[%s5 + $0xf0] sm:$0xff] %v909
  %974 = vst [vmem:[%s5 + $0xf8] sm:$0xff] %v910
  %975 = vst [vmem:[%s5 + $0x100] sm:$0xff] %v911
  %976 = vst [vmem:[%s5 + $0x108] sm:$0xff] %v912
  %977 = vst [vmem:[%s5 + $0x110] sm:$0xff] %v913
  %978 = vst [vmem:[%s5 + $0x118] sm:$0xff] %v914
  %979 = vst [vmem:[%s5 + $0x120] sm:$0xff] %v915
  %980 = vst [vmem:[%s5 + $0x128] sm:$0xff] %v916
  %981 = vst [vmem:[%s5 + $0x130] sm:$0xff] %v917
  %982 = vst [vmem:[%s5 + $0x138] sm:$0xff] %v918
  %983 = vst [vmem:[%s5 + $0x140] sm:$0xff] %v919
  %984 = vst [vmem:[%s5 + $0x148] sm:$0xff] %v920
  %985 = vst [vmem:[%s5 + $0x150] sm:$0xff] %v921
  %986 = vst [vmem:[%s5 + $0x158] sm:$0xff] %v922
  %987 = vst [vmem:[%s5 + $0x160] sm:$0xff] %v923
  %988 = vst [vmem:[%s5 + $0x168] sm:$0xff] %v924
  %989 = vst [vmem:[%s5 + $0x170] sm:$0xff] %v925
  %990 = vst [vmem:[%s5 + $0x178] sm:$0xff] %v926
  %991 = vst [vmem:[%s5 + $0x180] sm:$0xff] %v927
  %992 = vst [vmem:[%s5 + $0x188] sm:$0xff] %v928
  %993 = vst [vmem:[%s5 + $0x190] sm:$0xff] %v929
  %994 = vst [vmem:[%s5 + $0x198] sm:$0xff] %v930
  %995 = vst [vmem:[%s5 + $0x1a0] sm:$0xff] %v931
  %996 = vst [vmem:[%s5 + $0x1a8] sm:$0xff] %v932
  %997 = vst [vmem:[%s5 + $0x1b0] sm:$0xff] %v933
  %998 = vst [vmem:[%s5 + $0x1b8] sm:$0xff] %v934
  %999 = vst [vmem:[%s5 + $0x1c0] sm:$0xff] %v935
  %1000 = vst [vmem:[%s5 + $0x1c8] sm:$0xff] %v936
  %1001 = vst [vmem:[%s5 + $0x1d0] sm:$0xff] %v937
  %1002 = vst [vmem:[%s5 + $0x1d8] sm:$0xff] %v938
  %1003 = vst [vmem:[%s5 + $0x1e0] sm:$0xff] %v939
  %1004 = vst [vmem:[%s5 + $0x1e8] sm:$0xff] %v940
  %1005 = vst [vmem:[%s5 + $0x1f0] sm:$0xff] %v941
  %1006 = vst [vmem:[%s5 + $0x1f8] sm:$0xff] %v942
  // Predicated region
  $region22: #{forward.3} parent=0 // pred_check
    _
  $region23: #{forward.3} parent=0 // pred_check_branch
    %1008 = sbr.rel (0) target = $region25
  $region24: #{forward.3} parent=0 // pred_region
    _
  $region25: #{forward.3} parent=0 // pred_fallthru
    _
  // Predicated region
  $region26: #{forward.3} parent=0 // pred_check
    _
  $region27: #{forward.3} parent=0 // pred_check_branch
    %1010 = sbr.rel (0) target = $region29
  $region28: #{forward.3} parent=0 // pred_region
    _
  $region29: #{forward.3} parent=0 // pred_fallthru
    _

</llo_original>
